<compile_context>
chip_gen: v7x
topology: tpu7x:2x2x1
jax: 0.10.0
libtpu: 0.0.40
codegen_flags: <defaults>
</compile_context>

<pallas_src>
import jax
import jax.numpy as jnp
from jax.experimental import pallas as pl
from jax.experimental.pallas import tpu as pltpu


def _round_up(x, m):
    return ((x + m - 1) // m) * m


# ----------------------------------------------------------------------------
# Fused kernel: tiled GIN aggregation + MLP + mean-pool + classification head.
# grid = (row_tiles, k_tiles); agg/pooled are VMEM scratch accumulators.
# ----------------------------------------------------------------------------
def fused_gin_head_kernel(
        a_ref, x_ref, p_ref,                       # tiled inputs
        w1_ref, b1_ref, w2_ref, b2_ref,            # GIN MLP (resident)
        wl1_ref, bl1_ref, gamma_ref, beta_ref,     # linear1 + BN (resident)
        watt_ref, batt_ref, av_ref,                # attack attention (resident)
        wcls_ref, bcls_ref,                        # classifier (resident, lane-padded)
        logits_ref, probs_ref,                     # outputs (lane-padded)
        agg_ref, pooled_ref):                      # VMEM scratch
    i = pl.program_id(0)
    k = pl.program_id(1)
    ni = pl.num_programs(0)
    nk = pl.num_programs(1)

    # init the cross-row-tile pooled accumulator once
    @pl.when(jnp.logical_and(i == 0, k == 0))
    def _():
        pooled_ref[...] = jnp.zeros_like(pooled_ref)

    # init the per-row-tile aggregation accumulator
    @pl.when(k == 0)
    def _():
        agg_ref[...] = jnp.zeros_like(agg_ref)

    # agg += A[i,k] @ x[k]   (bf16 operands, f32 accumulation on the MXU)
    agg_ref[...] += jnp.dot(a_ref[...], x_ref[...],
                            preferred_element_type=jnp.float32)

    # After the reduction over k finishes for this row tile: GIN MLP + pooling.
    @pl.when(k == nk - 1)
    def _():
        z = jnp.dot(agg_ref[...], w1_ref[...],
                    preferred_element_type=jnp.float32) + b1_ref[...]
        z = jnp.maximum(z, 0.0)
        h = jnp.dot(z, w2_ref[...],
                    preferred_element_type=jnp.float32) + b2_ref[...]
        h = jnp.maximum(h, 0.0)                               # [tm, 512]
        # global_mean_pool contribution of this row tile: [G, tm] @ [tm, 512]
        pooled_ref[...] += jnp.dot(p_ref[...], h,
                                   preferred_element_type=jnp.float32)

    # Epilogue on the very last grid step: head runs entirely on-chip.
    @pl.when(jnp.logical_and(i == ni - 1, k == nk - 1))
    def _():
        pooled = pooled_ref[...]                              # [G, 512]
        t = jnp.dot(pooled, wl1_ref[...],
                    preferred_element_type=jnp.float32) + bl1_ref[...]

        # BatchNorm1d (training mode: batch statistics, biased var, eps=1e-5)
        mean = jnp.mean(t, axis=0, keepdims=True)
        var = jnp.mean((t - mean) * (t - mean), axis=0, keepdims=True)
        t = (t - mean) * jax.lax.rsqrt(var + 1e-5)
        t = gamma_ref[...] * t + beta_ref[...]
        t = jnp.maximum(t, 0.0)                               # [G, 256]

        # attack_attention: [G,3]@[3,256] as 3 VPU broadcast FMAs (K=3 is a
        # degenerate MXU shape — keep it off the systolic array).
        av = av_ref[...]                                      # [G, 3]
        watt = watt_ref[...]                                  # [3, 256]
        ap = batt_ref[...]                                    # [1, 256]
        for j in range(av.shape[1]):                          # static unroll
            ap = ap + av[:, j:j + 1] * watt[j:j + 1, :]

        a = ap * t                                            # torch.mul

        logits = jnp.dot(a, wcls_ref[...],
                         preferred_element_type=jnp.float32) + bcls_ref[...]
        logits_ref[...] = logits
        probs_ref[...] = jax.nn.sigmoid(logits)


def drug_classification_forward(v, attack_vector, edges, batch, params,
                                num_graphs, num_labels):
    """Forward pass. `v`: [N, F_in] node features, `edges`: [2, E] int32,
    `attack_vector`: [G, 3], `batch`: [N] int32 graph assignment."""
    N, F_in = v.shape
    f32 = jnp.float32
    bf16 = jnp.bfloat16

    hidden = params["gin_w1"].shape[1]

    # --- tiling / padding choices --------------------------------------------
    tile = 512 if N >= 512 else 128          # row / reduction tile over nodes
    Npad = _round_up(N, tile)                # pad node count to tile multiple
    Fpad = _round_up(max(F_in, 128), 128)    # lane-dense feature dim
    Lpad = _round_up(max(num_labels, 128), 128)  # lane-dense classifier output

    # --- glue: dense adjacency with GIN self-loop term (1 + eps) * I ---------
    # (bf16: edge counts are small integers, exactly representable)
    eps = 0.0
    adj = jnp.zeros((Npad, Npad), f32).at[edges[1], edges[0]].add(1.0)
    adj = adj + (1.0 + eps) * jnp.eye(Npad, dtype=f32)
    adj = adj.astype(bf16)
    # TODO(synk): for large sparse graphs replace dense A with CSR/segment
    # aggregation (scalar-prefetched row offsets) to avoid O(N^2) traffic.

    v_pad = jnp.zeros((Npad, Fpad), bf16).at[:N, :F_in].set(v.astype(bf16))

    # --- glue: mean-pooling matrix P[g, n] = [batch[n] == g] / count[g] ------
    one_hot = (batch[None, :] ==
               jnp.arange(num_graphs, dtype=batch.dtype)[:, None]).astype(f32)
    counts = jnp.maximum(one_hot.sum(axis=1, keepdims=True), 1.0)
    pool = jnp.zeros((num_graphs, Npad), f32).at[:, :N].set(one_hot / counts)

    # --- pad parameters to lane-dense shapes ---------------------------------
    w1_pad = jnp.zeros((Fpad, hidden), f32).at[:F_in, :].set(params["gin_w1"])
    wcls_pad = jnp.zeros((256, Lpad), f32).at[:, :num_labels].set(params["cls_w"])
    bcls_pad = jnp.zeros((1, Lpad), f32).at[:, :num_labels].set(params["cls_b"])

    ni = Npad // tile
    nk = Npad // tile
    G = num_graphs

    def const_map(i, k):
        return (0, 0)

    grid_spec = pltpu.PrefetchScalarGridSpec(
        num_scalar_prefetch=0,
        grid=(ni, nk),
        in_specs=[
            pl.BlockSpec((tile, tile), lambda i, k: (i, k)),   # A tile
            pl.BlockSpec((tile, Fpad), lambda i, k: (k, 0)),   # x tile
            pl.BlockSpec((G, tile), lambda i, k: (0, i)),      # pool slice
            pl.BlockSpec((Fpad, hidden), const_map),           # gin W1
            pl.BlockSpec((1, hidden), const_map),              # gin b1
            pl.BlockSpec((hidden, 512), const_map),            # gin W2
            pl.BlockSpec((1, 512), const_map),                 # gin b2
            pl.BlockSpec((512, 256), const_map),               # linear1 W
            pl.BlockSpec((1, 256), const_map),                 # linear1 b
            pl.BlockSpec((1, 256), const_map),                 # bn gamma
            pl.BlockSpec((1, 256), const_map),                 # bn beta
            pl.BlockSpec((3, 256), const_map),                 # attack W
            pl.BlockSpec((1, 256), const_map),                 # attack b
            pl.BlockSpec((G, 3), const_map),                   # attack_vector
            pl.BlockSpec((256, Lpad), const_map),              # classifier W
            pl.BlockSpec((1, Lpad), const_map),                # classifier b
        ],
        out_specs=(
            pl.BlockSpec((G, Lpad), const_map),                # logits (padded)
            pl.BlockSpec((G, Lpad), const_map),                # probs  (padded)
        ),
        scratch_shapes=[
            pltpu.VMEM((tile, Fpad), jnp.float32),             # agg accumulator
            pltpu.VMEM((G, 512), jnp.float32),                 # pooled accumulator
        ],
    )

    logits_pad, probs_pad = pl.pallas_call(
        fused_gin_head_kernel,
        out_shape=(
            jax.ShapeDtypeStruct((G, Lpad), f32),
            jax.ShapeDtypeStruct((G, Lpad), f32),
        ),
        grid_spec=grid_spec,
        compiler_params=pltpu.CompilerParams(
            # pooled accumulates over the row-tile axis and agg over k, so both
            # axes are reductions for some carried state -> "arbitrary".
            dimension_semantics=("arbitrary", "arbitrary"),
            vmem_limit_bytes=32 * 1024 * 1024,
        ),
    )(adj, v_pad, pool,
      w1_pad, params["gin_b1"], params["gin_w2"], params["gin_b2"],
      params["l1_w"], params["l1_b"], params["bn_gamma"], params["bn_beta"],
      params["att_w"], params["att_b"], attack_vector.astype(f32),
      wcls_pad, bcls_pad)

    return logits_pad[:, :num_labels], probs_pad[:, :num_labels]


def init_params(key, f_in, hidden, num_labels):
    ks = jax.random.split(key, 6)
    f32 = jnp.float32
    scale = 0.1
    return {
        # GIN MLP: F_in -> hidden -> 512
        "gin_w1": scale * jax.random.normal(ks[0], (f_in, hidden), f32),
        "gin_b1": jnp.zeros((1, hidden), f32),
        "gin_w2": scale * jax.random.normal(ks[1], (hidden, 512), f32),
        "gin_b2": jnp.zeros((1, 512), f32),
        # linear1: 512 -> 256
        "l1_w": scale * jax.random.normal(ks[2], (512, 256), f32),
        "l1_b": jnp.zeros((1, 256), f32),
        # BatchNorm1d(256)
        "bn_gamma": jnp.ones((1, 256), f32),
        "bn_beta": jnp.zeros((1, 256), f32),
        # attack_attention: 3 -> 256
        "att_w": scale * jax.random.normal(ks[3], (3, 256), f32),
        "att_b": jnp.zeros((1, 256), f32),
        # classifier: 256 -> num_labels
        "cls_w": scale * jax.random.normal(ks[4], (256, num_labels), f32),
        "cls_b": jnp.zeros((1, num_labels), f32),
    }


if __name__ == "__main__":
    key = jax.random.PRNGKey(0)
    k_v, k_av, k_p = jax.random.split(key, 3)

    # Small deterministic example: 2 graphs of 128 nodes each (so the grid is
    # genuinely tiled: 2x2 tiles of 128), 32-dim node features, 10 labels.
    N, F_IN, HIDDEN, G, NUM_LABELS = 256, 32, 128, 2, 10
    NODES_PER_GRAPH = N // G

    v = jax.random.normal(k_v, (N, F_IN), jnp.float32)
    attack_vector = jax.random.normal(k_av, (G, 3), jnp.float32)

    # simple ring edges inside each graph (directed both ways)
    src = jnp.arange(N, dtype=jnp.int32)
    dst = jnp.where(src % NODES_PER_GRAPH == NODES_PER_GRAPH - 1,
                    src - (NODES_PER_GRAPH - 1), src + 1).astype(jnp.int32)
    edges = jnp.concatenate(
        [jnp.stack([src, dst]), jnp.stack([dst, src])], axis=1)  # [2, 2N]
    batch = jnp.repeat(jnp.arange(G, dtype=jnp.int32), NODES_PER_GRAPH)

    params = init_params(k_p, F_IN, HIDDEN, NUM_LABELS)

    logits, probs = drug_classification_forward(
        v, attack_vector, edges, batch, params, num_graphs=G,
        num_labels=NUM_LABELS)
    jax.block_until_ready((logits, probs))

    assert logits.shape == (G, NUM_LABELS) and probs.shape == (G, NUM_LABELS)
    assert bool(jnp.all(jnp.isfinite(logits)))
    assert bool(jnp.all((probs >= 0) & (probs <= 1)))
    print("KERNEL_OK")
</pallas_src>

<mosaic_0001>
module attributes {stable_mosaic.version = 11 : i64} {
  func.func @fused_gin_head_kernel(%arg0: i32, %arg1: i32, %arg2: memref<128x128xbf16, #tpu.memory_space<vmem>>, %arg3: memref<128x128xbf16, #tpu.memory_space<vmem>>, %arg4: memref<2x128xf32, #tpu.memory_space<vmem>>, %arg5: memref<128x128xf32, #tpu.memory_space<vmem>>, %arg6: memref<1x128xf32, #tpu.memory_space<vmem>>, %arg7: memref<128x512xf32, #tpu.memory_space<vmem>>, %arg8: memref<1x512xf32, #tpu.memory_space<vmem>>, %arg9: memref<512x256xf32, #tpu.memory_space<vmem>>, %arg10: memref<1x256xf32, #tpu.memory_space<vmem>>, %arg11: memref<1x256xf32, #tpu.memory_space<vmem>>, %arg12: memref<1x256xf32, #tpu.memory_space<vmem>>, %arg13: memref<3x256xf32, #tpu.memory_space<vmem>>, %arg14: memref<1x256xf32, #tpu.memory_space<vmem>>, %arg15: memref<2x3xf32, #tpu.memory_space<vmem>>, %arg16: memref<256x128xf32, #tpu.memory_space<vmem>>, %arg17: memref<1x128xf32, #tpu.memory_space<vmem>>, %arg18: memref<2x128xf32, #tpu.memory_space<vmem>>, %arg19: memref<2x128xf32, #tpu.memory_space<vmem>>, %arg20: memref<128x128xf32, #tpu.memory_space<vmem>>, %arg21: memref<2x512xf32, #tpu.memory_space<vmem>>) attributes {dimension_semantics = [#tpu.dimension_semantics<arbitrary>, #tpu.dimension_semantics<arbitrary>], iteration_bounds = array<i64: 2, 2>, scalar_prefetch = 0 : i64, scratch_operands = 2 : i64, tpu.core_type = #tpu.core_type<tc>, window_params = [{transform_indices = @transform_0, window_bounds = array<i64: 128, 128>}, {transform_indices = @transform_1, window_bounds = array<i64: 128, 128>}, {transform_indices = @transform_2, window_bounds = array<i64: 2, 128>}, {pipeline_mode = #tpu.pipeline_mode<synchronous>, transform_indices = @transform_3, window_bounds = array<i64: 128, 128>}, {pipeline_mode = #tpu.pipeline_mode<synchronous>, transform_indices = @transform_4, window_bounds = array<i64: 1, 128>}, {pipeline_mode = #tpu.pipeline_mode<synchronous>, transform_indices = @transform_5, window_bounds = array<i64: 128, 512>}, {pipeline_mode = #tpu.pipeline_mode<synchronous>, transform_indices = @transform_6, window_bounds = array<i64: 1, 512>}, {pipeline_mode = #tpu.pipeline_mode<synchronous>, transform_indices = @transform_7, window_bounds = array<i64: 512, 256>}, {pipeline_mode = #tpu.pipeline_mode<synchronous>, transform_indices = @transform_8, window_bounds = array<i64: 1, 256>}, {pipeline_mode = #tpu.pipeline_mode<synchronous>, transform_indices = @transform_9, window_bounds = array<i64: 1, 256>}, {pipeline_mode = #tpu.pipeline_mode<synchronous>, transform_indices = @transform_10, window_bounds = array<i64: 1, 256>}, {pipeline_mode = #tpu.pipeline_mode<synchronous>, transform_indices = @transform_11, window_bounds = array<i64: 3, 256>}, {pipeline_mode = #tpu.pipeline_mode<synchronous>, transform_indices = @transform_12, window_bounds = array<i64: 1, 256>}, {pipeline_mode = #tpu.pipeline_mode<synchronous>, transform_indices = @transform_13, window_bounds = array<i64: 2, 3>}, {pipeline_mode = #tpu.pipeline_mode<synchronous>, transform_indices = @transform_14, window_bounds = array<i64: 256, 128>}, {pipeline_mode = #tpu.pipeline_mode<synchronous>, transform_indices = @transform_15, window_bounds = array<i64: 1, 128>}, {pipeline_mode = #tpu.pipeline_mode<synchronous>, transform_indices = @transform_16, window_bounds = array<i64: 2, 128>}, {pipeline_mode = #tpu.pipeline_mode<synchronous>, transform_indices = @transform_17, window_bounds = array<i64: 2, 128>}]} {
    %c0_i32 = arith.constant 0 : i32
    %0 = arith.cmpi eq, %arg0, %c0_i32 : i32
    %c0_i32_0 = arith.constant 0 : i32
    %1 = arith.cmpi eq, %arg1, %c0_i32_0 : i32
    %2 = arith.andi %0, %1 : i1
    %3 = arith.extui %2 : i1 to i32
    %c0_i32_1 = arith.constant 0 : i32
    %4 = arith.cmpi ne, %3, %c0_i32_1 : i32
    scf.if %4 {
      %cst_15 = arith.constant 0.000000e+00 : f32
      %22 = vector.broadcast %cst_15 : f32 to vector<2x512xf32>
      %c0_16 = arith.constant 0 : index
      %c0_17 = arith.constant 0 : index
      %23 = vector.load %arg21[%c0_16, %c0_17] : memref<2x512xf32, #tpu.memory_space<vmem>>, vector<2x512xf32>
      tpu.vector_store %arg21[%c0_16, %c0_17], %22 {strides = array<i32>} : memref<2x512xf32, #tpu.memory_space<vmem>>, vector<2x512xf32>,
    } else {
    }
    %c0_i32_2 = arith.constant 0 : i32
    %5 = arith.cmpi eq, %arg1, %c0_i32_2 : i32
    %6 = arith.extui %5 : i1 to i32
    %c0_i32_3 = arith.constant 0 : i32
    %7 = arith.cmpi ne, %6, %c0_i32_3 : i32
    scf.if %7 {
      %cst_15 = arith.constant 0.000000e+00 : f32
      %22 = vector.broadcast %cst_15 : f32 to vector<128x128xf32>
      %c0_16 = arith.constant 0 : index
      %c0_17 = arith.constant 0 : index
      %23 = vector.load %arg20[%c0_16, %c0_17] : memref<128x128xf32, #tpu.memory_space<vmem>>, vector<128x128xf32>
      tpu.vector_store %arg20[%c0_16, %c0_17], %22 {strides = array<i32>} : memref<128x128xf32, #tpu.memory_space<vmem>>, vector<128x128xf32>,
    } else {
    }
    %c0 = arith.constant 0 : index
    %c0_4 = arith.constant 0 : index
    %8 = vector.load %arg20[%c0, %c0_4] : memref<128x128xf32, #tpu.memory_space<vmem>>, vector<128x128xf32>
    %c0_5 = arith.constant 0 : index
    %c0_6 = arith.constant 0 : index
    %9 = vector.load %arg2[%c0_5, %c0_6] : memref<128x128xbf16, #tpu.memory_space<vmem>>, vector<128x128xbf16>
    %c0_7 = arith.constant 0 : index
    %c0_8 = arith.constant 0 : index
    %10 = vector.load %arg3[%c0_7, %c0_8] : memref<128x128xbf16, #tpu.memory_space<vmem>>, vector<128x128xbf16>
    %cst = arith.constant dense<0.000000e+00> : vector<128x128xf32>
    %11 = tpu.matmul %9, %10, %cst {dimension_numbers = #tpu.dot_dimension_numbers<[1], [0], [0], [1], [0, 0, 1, 1], [], []>} : vector<128x128xbf16>, vector<128x128xbf16>, vector<128x128xf32> -> vector<128x128xf32>
    %12 = arith.addf %8, %11 : vector<128x128xf32>
    %c0_9 = arith.constant 0 : index
    %c0_10 = arith.constant 0 : index
    %13 = vector.load %arg20[%c0_9, %c0_10] : memref<128x128xf32, #tpu.memory_space<vmem>>, vector<128x128xf32>
    tpu.vector_store %arg20[%c0_9, %c0_10], %12 {strides = array<i32>} : memref<128x128xf32, #tpu.memory_space<vmem>>, vector<128x128xf32>,
    %c1_i32 = arith.constant 1 : i32
    %14 = arith.cmpi eq, %arg1, %c1_i32 : i32
    %15 = arith.extui %14 : i1 to i32
    %c0_i32_11 = arith.constant 0 : i32
    %16 = arith.cmpi ne, %15, %c0_i32_11 : i32
    scf.if %16 {
      %c0_15 = arith.constant 0 : index
      %c0_16 = arith.constant 0 : index
      %22 = vector.load %arg20[%c0_15, %c0_16] : memref<128x128xf32, #tpu.memory_space<vmem>>, vector<128x128xf32>
      %c0_17 = arith.constant 0 : index
      %c0_18 = arith.constant 0 : index
      %23 = vector.load %arg5[%c0_17, %c0_18] : memref<128x128xf32, #tpu.memory_space<vmem>>, vector<128x128xf32>
      %cst_19 = arith.constant dense<0.000000e+00> : vector<128x128xf32>
      %24 = tpu.matmul %22, %23, %cst_19 {dimension_numbers = #tpu.dot_dimension_numbers<[1], [0], [0], [1], [0, 0, 1, 1], [], []>} : vector<128x128xf32>, vector<128x128xf32>, vector<128x128xf32> -> vector<128x128xf32>
      %c0_20 = arith.constant 0 : index
      %c0_21 = arith.constant 0 : index
      %25 = vector.load %arg6[%c0_20, %c0_21] : memref<1x128xf32, #tpu.memory_space<vmem>>, vector<1x128xf32>
      %26 = vector.broadcast %25 : vector<1x128xf32> to vector<128x128xf32>
      %27 = arith.addf %24, %26 : vector<128x128xf32>
      %cst_22 = arith.constant 0.000000e+00 : f32
      %28 = vector.broadcast %cst_22 : f32 to vector<128x128xf32>
      %29 = arith.maximumf %27, %28 : vector<128x128xf32>
      %c0_23 = arith.constant 0 : index
      %c0_24 = arith.constant 0 : index
      %30 = vector.load %arg7[%c0_23, %c0_24] : memref<128x512xf32, #tpu.memory_space<vmem>>, vector<128x512xf32>
      %cst_25 = arith.constant dense<0.000000e+00> : vector<128x512xf32>
      %31 = tpu.matmul %29, %30, %cst_25 {dimension_numbers = #tpu.dot_dimension_numbers<[1], [0], [0], [1], [0, 0, 1, 1], [], []>} : vector<128x128xf32>, vector<128x512xf32>, vector<128x512xf32> -> vector<128x512xf32>
      %c0_26 = arith.constant 0 : index
      %c0_27 = arith.constant 0 : index
      %32 = vector.load %arg8[%c0_26, %c0_27] : memref<1x512xf32, #tpu.memory_space<vmem>>, vector<1x512xf32>
      %33 = vector.broadcast %32 : vector<1x512xf32> to vector<128x512xf32>
      %34 = arith.addf %31, %33 : vector<128x512xf32>
      %cst_28 = arith.constant 0.000000e+00 : f32
      %35 = vector.broadcast %cst_28 : f32 to vector<128x512xf32>
      %36 = arith.maximumf %34, %35 : vector<128x512xf32>
      %c0_29 = arith.constant 0 : index
      %c0_30 = arith.constant 0 : index
      %37 = vector.load %arg21[%c0_29, %c0_30] : memref<2x512xf32, #tpu.memory_space<vmem>>, vector<2x512xf32>
      %c0_31 = arith.constant 0 : index
      %c0_32 = arith.constant 0 : index
      %38 = vector.load %arg4[%c0_31, %c0_32] : memref<2x128xf32, #tpu.memory_space<vmem>>, vector<2x128xf32>
      %cst_33 = arith.constant dense<0.000000e+00> : vector<2x512xf32>
      %39 = tpu.matmul %38, %36, %cst_33 {dimension_numbers = #tpu.dot_dimension_numbers<[1], [0], [0], [1], [0, 0, 1, 1], [], []>} : vector<2x128xf32>, vector<128x512xf32>, vector<2x512xf32> -> vector<2x512xf32>
      %40 = arith.addf %37, %39 : vector<2x512xf32>
      %c0_34 = arith.constant 0 : index
      %c0_35 = arith.constant 0 : index
      %41 = vector.load %arg21[%c0_34, %c0_35] : memref<2x512xf32, #tpu.memory_space<vmem>>, vector<2x512xf32>
      tpu.vector_store %arg21[%c0_34, %c0_35], %40 {strides = array<i32>} : memref<2x512xf32, #tpu.memory_space<vmem>>, vector<2x512xf32>,
    } else {
    }
    %c1_i32_12 = arith.constant 1 : i32
    %17 = arith.cmpi eq, %arg0, %c1_i32_12 : i32
    %c1_i32_13 = arith.constant 1 : i32
    %18 = arith.cmpi eq, %arg1, %c1_i32_13 : i32
    %19 = arith.andi %17, %18 : i1
    %20 = arith.extui %19 : i1 to i32
    %c0_i32_14 = arith.constant 0 : i32
    %21 = arith.cmpi ne, %20, %c0_i32_14 : i32
    scf.if %21 {
      %c0_15 = arith.constant 0 : index
      %c0_16 = arith.constant 0 : index
      %22 = vector.load %arg21[%c0_15, %c0_16] : memref<2x512xf32, #tpu.memory_space<vmem>>, vector<2x512xf32>
      %c0_17 = arith.constant 0 : index
      %c0_18 = arith.constant 0 : index
      %23 = vector.load %arg9[%c0_17, %c0_18] : memref<512x256xf32, #tpu.memory_space<vmem>>, vector<512x256xf32>
      %cst_19 = arith.constant dense<0.000000e+00> : vector<2x256xf32>
      %24 = tpu.matmul %22, %23, %cst_19 {dimension_numbers = #tpu.dot_dimension_numbers<[1], [0], [0], [1], [0, 0, 1, 1], [], []>} : vector<2x512xf32>, vector<512x256xf32>, vector<2x256xf32> -> vector<2x256xf32>
      %c0_20 = arith.constant 0 : index
      %c0_21 = arith.constant 0 : index
      %25 = vector.load %arg10[%c0_20, %c0_21] : memref<1x256xf32, #tpu.memory_space<vmem>>, vector<1x256xf32>
      %26 = vector.broadcast %25 : vector<1x256xf32> to vector<2x256xf32>
      %27 = arith.addf %24, %26 : vector<2x256xf32>
      %cst_22 = arith.constant dense<0.000000e+00> : vector<256xf32>
      %28 = vector.multi_reduction <add>, %27, %cst_22 [0] : vector<2x256xf32> to vector<256xf32>
      %29 = vector.shape_cast %28 : vector<256xf32> to vector<1x256xf32>
      %cst_23 = arith.constant 2.000000e+00 : f32
      %30 = vector.broadcast %cst_23 : f32 to vector<1x256xf32>
      %31 = arith.divf %29, %30 : vector<1x256xf32>
      %32 = vector.broadcast %31 : vector<1x256xf32> to vector<2x256xf32>
      %33 = arith.subf %27, %32 : vector<2x256xf32>
      %34 = vector.broadcast %31 : vector<1x256xf32> to vector<2x256xf32>
      %35 = arith.subf %27, %34 : vector<2x256xf32>
      %36 = arith.mulf %33, %35 : vector<2x256xf32>
      %cst_24 = arith.constant dense<0.000000e+00> : vector<256xf32>
      %37 = vector.multi_reduction <add>, %36, %cst_24 [0] : vector<2x256xf32> to vector<256xf32>
      %38 = vector.shape_cast %37 : vector<256xf32> to vector<1x256xf32>
      %cst_25 = arith.constant 2.000000e+00 : f32
      %39 = vector.broadcast %cst_25 : f32 to vector<1x256xf32>
      %40 = arith.divf %38, %39 : vector<1x256xf32>
      %41 = vector.broadcast %31 : vector<1x256xf32> to vector<2x256xf32>
      %42 = arith.subf %27, %41 : vector<2x256xf32>
      %cst_26 = arith.constant 9.99999974E-6 : f32
      %43 = vector.broadcast %cst_26 : f32 to vector<1x256xf32>
      %44 = arith.addf %40, %43 : vector<1x256xf32>
      %45 = math.rsqrt %44 : vector<1x256xf32>
      %46 = vector.broadcast %45 : vector<1x256xf32> to vector<2x256xf32>
      %47 = arith.mulf %42, %46 : vector<2x256xf32>
      %c0_27 = arith.constant 0 : index
      %c0_28 = arith.constant 0 : index
      %48 = vector.load %arg11[%c0_27, %c0_28] : memref<1x256xf32, #tpu.memory_space<vmem>>, vector<1x256xf32>
      %49 = vector.broadcast %48 : vector<1x256xf32> to vector<2x256xf32>
      %50 = arith.mulf %49, %47 : vector<2x256xf32>
      %c0_29 = arith.constant 0 : index
      %c0_30 = arith.constant 0 : index
      %51 = vector.load %arg12[%c0_29, %c0_30] : memref<1x256xf32, #tpu.memory_space<vmem>>, vector<1x256xf32>
      %52 = vector.broadcast %51 : vector<1x256xf32> to vector<2x256xf32>
      %53 = arith.addf %50, %52 : vector<2x256xf32>
      %cst_31 = arith.constant 0.000000e+00 : f32
      %54 = vector.broadcast %cst_31 : f32 to vector<2x256xf32>
      %55 = arith.maximumf %53, %54 : vector<2x256xf32>
      %c0_32 = arith.constant 0 : index
      %c0_33 = arith.constant 0 : index
      %56 = vector.load %arg15[%c0_32, %c0_33] : memref<2x3xf32, #tpu.memory_space<vmem>>, vector<2x3xf32>
      %c0_34 = arith.constant 0 : index
      %c0_35 = arith.constant 0 : index
      %57 = vector.load %arg13[%c0_34, %c0_35] : memref<3x256xf32, #tpu.memory_space<vmem>>, vector<3x256xf32>
      %c0_36 = arith.constant 0 : index
      %c0_37 = arith.constant 0 : index
      %58 = vector.load %arg14[%c0_36, %c0_37] : memref<1x256xf32, #tpu.memory_space<vmem>>, vector<1x256xf32>
      %59 = vector.extract_strided_slice %56 {offsets = [0, 0], sizes = [2, 1], strides = [1, 1]} : vector<2x3xf32> to vector<2x1xf32>
      %60 = vector.extract_strided_slice %57 {offsets = [0, 0], sizes = [1, 256], strides = [1, 1]} : vector<3x256xf32> to vector<1x256xf32>
      %61 = vector.broadcast %59 : vector<2x1xf32> to vector<2x256xf32>
      %62 = vector.broadcast %60 : vector<1x256xf32> to vector<2x256xf32>
      %63 = arith.mulf %61, %62 : vector<2x256xf32>
      %64 = vector.broadcast %58 : vector<1x256xf32> to vector<2x256xf32>
      %65 = arith.addf %64, %63 : vector<2x256xf32>
      %66 = vector.extract_strided_slice %56 {offsets = [0, 1], sizes = [2, 1], strides = [1, 1]} : vector<2x3xf32> to vector<2x1xf32>
      %67 = vector.extract_strided_slice %57 {offsets = [1, 0], sizes = [1, 256], strides = [1, 1]} : vector<3x256xf32> to vector<1x256xf32>
      %68 = vector.broadcast %66 : vector<2x1xf32> to vector<2x256xf32>
      %69 = vector.broadcast %67 : vector<1x256xf32> to vector<2x256xf32>
      %70 = arith.mulf %68, %69 : vector<2x256xf32>
      %71 = arith.addf %65, %70 : vector<2x256xf32>
      %72 = vector.extract_strided_slice %56 {offsets = [0, 2], sizes = [2, 1], strides = [1, 1]} : vector<2x3xf32> to vector<2x1xf32>
      %73 = vector.extract_strided_slice %57 {offsets = [2, 0], sizes = [1, 256], strides = [1, 1]} : vector<3x256xf32> to vector<1x256xf32>
      %74 = vector.broadcast %72 : vector<2x1xf32> to vector<2x256xf32>
      %75 = vector.broadcast %73 : vector<1x256xf32> to vector<2x256xf32>
      %76 = arith.mulf %74, %75 : vector<2x256xf32>
      %77 = arith.addf %71, %76 : vector<2x256xf32>
      %78 = arith.mulf %77, %55 : vector<2x256xf32>
      %c0_38 = arith.constant 0 : index
      %c0_39 = arith.constant 0 : index
      %79 = vector.load %arg16[%c0_38, %c0_39] : memref<256x128xf32, #tpu.memory_space<vmem>>, vector<256x128xf32>
      %cst_40 = arith.constant dense<0.000000e+00> : vector<2x128xf32>
      %80 = tpu.matmul %78, %79, %cst_40 {dimension_numbers = #tpu.dot_dimension_numbers<[1], [0], [0], [1], [0, 0, 1, 1], [], []>} : vector<2x256xf32>, vector<256x128xf32>, vector<2x128xf32> -> vector<2x128xf32>
      %c0_41 = arith.constant 0 : index
      %c0_42 = arith.constant 0 : index
      %81 = vector.load %arg17[%c0_41, %c0_42] : memref<1x128xf32, #tpu.memory_space<vmem>>, vector<1x128xf32>
      %82 = vector.broadcast %81 : vector<1x128xf32> to vector<2x128xf32>
      %83 = arith.addf %80, %82 : vector<2x128xf32>
      %c0_43 = arith.constant 0 : index
      %c0_44 = arith.constant 0 : index
      %84 = vector.load %arg18[%c0_43, %c0_44] : memref<2x128xf32, #tpu.memory_space<vmem>>, vector<2x128xf32>
      tpu.vector_store %arg18[%c0_43, %c0_44], %83 {strides = array<i32>} : memref<2x128xf32, #tpu.memory_space<vmem>>, vector<2x128xf32>,
      %85 = arith.negf %83 : vector<2x128xf32>
      %86 = math.exp %85 : vector<2x128xf32>
      %cst_45 = arith.constant 1.000000e+00 : f32
      %87 = vector.broadcast %cst_45 : f32 to vector<2x128xf32>
      %88 = arith.addf %87, %86 : vector<2x128xf32>
      %89 = arith.divf %87, %88 : vector<2x128xf32>
      %c0_46 = arith.constant 0 : index
      %c0_47 = arith.constant 0 : index
      %90 = vector.load %arg19[%c0_46, %c0_47] : memref<2x128xf32, #tpu.memory_space<vmem>>, vector<2x128xf32>
      tpu.vector_store %arg19[%c0_46, %c0_47], %89 {strides = array<i32>} : memref<2x128xf32, #tpu.memory_space<vmem>>, vector<2x128xf32>,
    } else {
    }
    return
  }
  func.func @transform_0(%arg0: i32, %arg1: i32) -> (i32, i32) {
    %c0_i32 = arith.constant 0 : i32
    return %arg0, %arg1 : i32, i32
  }
  func.func @transform_1(%arg0: i32, %arg1: i32) -> (i32, i32) {
    %c0_i32 = arith.constant 0 : i32
    %c0_i32_0 = arith.constant 0 : i32
    return %arg1, %c0_i32 : i32, i32
  }
  func.func @transform_2(%arg0: i32, %arg1: i32) -> (i32, i32) {
    %c0_i32 = arith.constant 0 : i32
    %c0_i32_0 = arith.constant 0 : i32
    return %c0_i32, %arg0 : i32, i32
  }
  func.func @transform_3(%arg0: i32, %arg1: i32) -> (i32, i32) {
    %c0_i32 = arith.constant 0 : i32
    %c0_i32_0 = arith.constant 0 : i32
    %c0_i32_1 = arith.constant 0 : i32
    return %c0_i32, %c0_i32_0 : i32, i32
  }
  func.func @transform_4(%arg0: i32, %arg1: i32) -> (i32, i32) {
    %c0_i32 = arith.constant 0 : i32
    %c0_i32_0 = arith.constant 0 : i32
    %c0_i32_1 = arith.constant 0 : i32
    return %c0_i32, %c0_i32_0 : i32, i32
  }
  func.func @transform_5(%arg0: i32, %arg1: i32) -> (i32, i32) {
    %c0_i32 = arith.constant 0 : i32
    %c0_i32_0 = arith.constant 0 : i32
    %c0_i32_1 = arith.constant 0 : i32
    return %c0_i32, %c0_i32_0 : i32, i32
  }
  func.func @transform_6(%arg0: i32, %arg1: i32) -> (i32, i32) {
    %c0_i32 = arith.constant 0 : i32
    %c0_i32_0 = arith.constant 0 : i32
    %c0_i32_1 = arith.constant 0 : i32
    return %c0_i32, %c0_i32_0 : i32, i32
  }
  func.func @transform_7(%arg0: i32, %arg1: i32) -> (i32, i32) {
    %c0_i32 = arith.constant 0 : i32
    %c0_i32_0 = arith.constant 0 : i32
    %c0_i32_1 = arith.constant 0 : i32
    return %c0_i32, %c0_i32_0 : i32, i32
  }
  func.func @transform_8(%arg0: i32, %arg1: i32) -> (i32, i32) {
    %c0_i32 = arith.constant 0 : i32
    %c0_i32_0 = arith.constant 0 : i32
    %c0_i32_1 = arith.constant 0 : i32
    return %c0_i32, %c0_i32_0 : i32, i32
  }
  func.func @transform_9(%arg0: i32, %arg1: i32) -> (i32, i32) {
    %c0_i32 = arith.constant 0 : i32
    %c0_i32_0 = arith.constant 0 : i32
    %c0_i32_1 = arith.constant 0 : i32
    return %c0_i32, %c0_i32_0 : i32, i32
  }
  func.func @transform_10(%arg0: i32, %arg1: i32) -> (i32, i32) {
    %c0_i32 = arith.constant 0 : i32
    %c0_i32_0 = arith.constant 0 : i32
    %c0_i32_1 = arith.constant 0 : i32
    return %c0_i32, %c0_i32_0 : i32, i32
  }
  func.func @transform_11(%arg0: i32, %arg1: i32) -> (i32, i32) {
    %c0_i32 = arith.constant 0 : i32
    %c0_i32_0 = arith.constant 0 : i32
    %c0_i32_1 = arith.constant 0 : i32
    return %c0_i32, %c0_i32_0 : i32, i32
  }
  func.func @transform_12(%arg0: i32, %arg1: i32) -> (i32, i32) {
    %c0_i32 = arith.constant 0 : i32
    %c0_i32_0 = arith.constant 0 : i32
    %c0_i32_1 = arith.constant 0 : i32
    return %c0_i32, %c0_i32_0 : i32, i32
  }
  func.func @transform_13(%arg0: i32, %arg1: i32) -> (i32, i32) {
    %c0_i32 = arith.constant 0 : i32
    %c0_i32_0 = arith.constant 0 : i32
    %c0_i32_1 = arith.constant 0 : i32
    return %c0_i32, %c0_i32_0 : i32, i32
  }
  func.func @transform_14(%arg0: i32, %arg1: i32) -> (i32, i32) {
    %c0_i32 = arith.constant 0 : i32
    %c0_i32_0 = arith.constant 0 : i32
    %c0_i32_1 = arith.constant 0 : i32
    return %c0_i32, %c0_i32_0 : i32, i32
  }
  func.func @transform_15(%arg0: i32, %arg1: i32) -> (i32, i32) {
    %c0_i32 = arith.constant 0 : i32
    %c0_i32_0 = arith.constant 0 : i32
    %c0_i32_1 = arith.constant 0 : i32
    return %c0_i32, %c0_i32_0 : i32, i32
  }
  func.func @transform_16(%arg0: i32, %arg1: i32) -> (i32, i32) {
    %c0_i32 = arith.constant 0 : i32
    %c0_i32_0 = arith.constant 0 : i32
    %c0_i32_1 = arith.constant 0 : i32
    return %c0_i32, %c0_i32_0 : i32, i32
  }
  func.func @transform_17(%arg0: i32, %arg1: i32) -> (i32, i32) {
    %c0_i32 = arith.constant 0 : i32
    %c0_i32_0 = arith.constant 0 : i32
    %c0_i32_1 = arith.constant 0 : i32
    return %c0_i32, %c0_i32_0 : i32, i32
  }
}

</mosaic_0001>

<llo_original>
// kernel: tpu_custom_call.1
$region0: #{tpu_custom_call.1}
  #allocation0 [shape = 'u32[]', space=smem, size = 0x4, offset = 0x4, fixed_abs, tag = 'smem constant byte address 0x4 - core index']
  #allocation1 [shape = 'u32[144,128]{1,0:T(1,128)}', space=vmem, size = 0x12000, scoped, tag = 'internal scratch']
  #allocation2 [shape = 'f32[128,128]{1,0:T(8,128)}', space=vmem, size = 0x10000, scoped, tag = 'scratch operand']
  #allocation3 [shape = 'f32[2,512]{1,0:T(2,128)}', space=vmem, size = 0x1000, scoped, tag = 'scratch operand']
  %s0 = inlined_call_operand.hbm [shape: bf16[256,256], index: 0, kind: input, shape index: {}]
  %s1 = inlined_call_operand.hbm [shape: bf16[256,128], index: 1, kind: input, shape index: {}]
  %s2 = inlined_call_operand.vmem [shape: f32[2,256], index: 2, kind: input, shape index: {}]
  %s3 = inlined_call_operand.hbm [shape: f32[128,128], index: 3, kind: input, shape index: {}]
  %s4 = inlined_call_operand.hbm [shape: f32[1,128], index: 4, kind: input, shape index: {}]
  %s5 = inlined_call_operand.hbm [shape: f32[128,512], index: 5, kind: input, shape index: {}]
  %s6 = inlined_call_operand.vmem [shape: f32[1,512], index: 6, kind: input, shape index: {}]
  %s7 = inlined_call_operand.hbm [shape: f32[512,256], index: 7, kind: input, shape index: {}]
  %s8 = inlined_call_operand.vmem [shape: f32[1,256], index: 8, kind: input, shape index: {}]
  %s9 = inlined_call_operand.vmem [shape: f32[1,256], index: 9, kind: input, shape index: {}]
  %s10 = inlined_call_operand.vmem [shape: f32[1,256], index: 10, kind: input, shape index: {}]
  %s11 = inlined_call_operand.vmem [shape: f32[3,256], index: 11, kind: input, shape index: {}]
  %s12 = inlined_call_operand.vmem [shape: f32[1,256], index: 12, kind: input, shape index: {}]
  %s13 = inlined_call_operand.vmem [shape: f32[2,3], index: 13, kind: input, shape index: {}]
  %s14 = inlined_call_operand.hbm [shape: f32[256,128], index: 14, kind: input, shape index: {}]
  %s15 = inlined_call_operand.vmem [shape: f32[1,128], index: 15, kind: input, shape index: {}]
  %s16 = inlined_call_operand.hbm [shape: f32[2,128], index: 16, kind: output, shape index: {0}]
  %s17 = inlined_call_operand.hbm [shape: f32[2,128], index: 17, kind: output, shape index: {1}]
  %18 = xla_tuple %s16, %s17
  %s19 = sld [smem:[#allocation0]]
  $region149: #{tpu_custom_call.1} parent=0
    _
  %s21 = ssub.s32 1, %s19
  %s22 = scalar_select 0, %s21, %s19
  $region1: #{tpu_custom_call.1} parent=0
    #allocation4 [shape = 'u8[65536]{0}', space=vmem, size = 0x10000, scoped, tag = 'input window, operand 0']
    #allocation5 [shape = 's32[2]{0}', space=sflag, size = 0x8, scoped, tag = 'scoped memory for tpu_custom_call.1']
    #allocation6 [shape = 's32[2]{0}', space=sflag, size = 0x8, scoped, tag = 'scoped memory for tpu_custom_call.1']
    #allocation7 [shape = 'u8[65536]{0}', space=vmem, size = 0x10000, scoped, tag = 'input window, operand 1']
    #allocation8 [shape = 's32[2]{0}', space=sflag, size = 0x8, scoped, tag = 'scoped memory for tpu_custom_call.1']
    #allocation9 [shape = 'u8[65536]{0}', space=vmem, size = 0x10000, scoped, tag = 'input window, operand 3, single buffered']
    #allocation10 [shape = 'u8[512]{0}', space=vmem, size = 0x400, scoped, tag = 'input window, operand 4, single buffered']
    #allocation11 [shape = 's32[1]{0}', space=sflag, size = 0x4, scoped, tag = 'scoped memory for tpu_custom_call.1']
    #allocation12 [shape = 'u8[262144]{0}', space=vmem, size = 0x40000, scoped, tag = 'input window, operand 5, single buffered']
    #allocation13 [shape = 'u8[524288]{0}', space=vmem, size = 0x80000, scoped, tag = 'input window, operand 7, single buffered']
    #allocation14 [shape = 's32[1]{0}', space=sflag, size = 0x4, scoped, tag = 'scoped memory for tpu_custom_call.1']
    #allocation15 [shape = 'u8[131072]{0}', space=vmem, size = 0x20000, scoped, tag = 'input window, operand 14, single buffered']
    #allocation16 [shape = 'u8[1024]{0}', space=vmem, size = 0x400, scoped, tag = 'output window, operand 0, single buffered']
    #allocation17 [shape = 'u8[1024]{0}', space=vmem, size = 0x400, scoped, tag = 'output window, operand 1, single buffered']
    #allocation18 [shape = 's32[1]{0}', space=sflag, size = 0x4, scoped, tag = 'scoped memory for tpu_custom_call.1']
    %23 = vsyncpa [#allocation5], 0
    %s24 = scalar_lea.sflag [#allocation5], 1
    %25 = vsyncpa %s24, 0
    %26 = vsyncpa [#allocation8], 0
    %s27 = scalar_lea.sflag [#allocation8], 1
    %28 = vsyncpa %s27, 0
    %29 = vsyncpa [#allocation11], 0
    %30 = vsyncpa [#allocation14], 0
    %31 = vsyncpa [#allocation6], 0
    %32 = vsyncpa [#allocation18], 0
    loop: start=0, step=1, limit=6
    $region2: #{tpu_custom_call.1} parent=1 // loop_pre_header
      _
    $region3: #{tpu_custom_call.1} parent=1 // loop_header
      %s34 = sphi 0, %s38
      %p35 = scmp.ge.s32.totalorder %s34, 6
      %s41 = sphi 0, %s53
      %s42 = sphi 0, %s49
      %s43 = sphi 0, %s41
      %s44 = sphi 0, %s42
      %s45 = sphi 0, %s43
      %s46 = sphi 0, %s44
      %s58 = sphi 0, %s60
      %s61 = sphi 0, %s58
      %s62 = sphi 0, %s61
      %s78 = sphi 0, %s62
      %s84 = sphi 0, %s86
      %s87 = sphi 0, %s84
      %s88 = sphi 0, %s87
      %s104 = sphi 0, %s88
      %s110 = sphi 0, %s112
      %s113 = sphi 0, %s110
      %s114 = sphi 0, %s113
      %s130 = sphi 0, %s114
      %s134 = sphi 0, %s134
      %s136 = sphi 0, %s134
      %s137 = sphi 0, %s136
      %s151 = sphi 0, %s137
      %s155 = sphi 0, %s155
      %s157 = sphi 0, %s155
      %s158 = sphi 0, %s157
      %s172 = sphi 0, %s158
      %s176 = sphi 0, %s176
      %s178 = sphi 0, %s176
      %s179 = sphi 0, %s178
      %s193 = sphi 0, %s179
      %s197 = sphi 0, %s197
      %s199 = sphi 0, %s197
      %s200 = sphi 0, %s199
      %s214 = sphi 0, %s200
      %s218 = sphi 0, %s218
      %s220 = sphi 0, %s218
      %s221 = sphi 0, %s220
      %s235 = sphi 0, %s221
      %s239 = sphi 0, %s239
      %s241 = sphi 0, %s239
      %s242 = sphi 0, %s241
      %s256 = sphi 0, %s242
      %s260 = sphi 0, %s260
      %s262 = sphi 0, %s260
      %s263 = sphi 0, %s262
      %s277 = sphi 0, %s263
      %s281 = sphi 0, %s281
      %s283 = sphi 0, %s281
      %s284 = sphi 0, %s283
      %s298 = sphi 0, %s284
      %s302 = sphi 0, %s302
      %s304 = sphi 0, %s302
      %s305 = sphi 0, %s304
      %s319 = sphi 0, %s305
      %s323 = sphi 0, %s323
      %s325 = sphi 0, %s323
      %s326 = sphi 0, %s325
      %s340 = sphi 0, %s326
      %s344 = sphi 0, %s344
      %s346 = sphi 0, %s344
      %s347 = sphi 0, %s346
      %s361 = sphi 0, %s347
      %s365 = sphi 0, %s365
      %s367 = sphi 0, %s365
      %s368 = sphi 0, %s367
      %s382 = sphi 0, %s368
      %s386 = sphi 0, %s386
      %s388 = sphi 0, %s386
      %s389 = sphi 0, %s388
      %s403 = sphi 0, %s389
      %s407 = sphi 0, %s407
      %s409 = sphi 0, %s407
      %s410 = sphi 0, %s409
      %s424 = sphi 0, %s410
      %s428 = sphi 0, %s428
      %s430 = sphi 0, %s428
      %s431 = sphi 0, %s430
      %s445 = sphi 0, %s431
    $region4: #{tpu_custom_call.1} parent=1 // loop_header_branch
      %37 = sbr.rel (%p35) target = $region8
    $region5: #{tpu_custom_call.1} parent=1 // loop_body
      %s39 = ssub.s32 %s34, 1
      %s40 = ssub.s32 %s34, 2
      %s47 = sadd.s32 1, %s42
      %p48 = scmp.ge.s32.totalorder %s47, 2
      %s49 = scalar_select %p48, 0, %s47
      %s50 = sadd.s32 1, %s41
      %s51 = scalar_select %p48, %s50, %s41
      %p52 = scmp.ge.s32.totalorder %s51, 2
      %s53 = scalar_select %p52, 0, %s51
      %s54 = ssub.s32 %s41, %s53
      %s55 = ssub.s32 %s42, %s49
      %s56 = sor.u32 %s54, %s55
      %p57 = scmp.eq.s32.totalorder %s56, 0
      %s59 = sadd.s32 %s58, 1
      %s60 = scalar_select %p57, %s58, %s59
      %p63 = pneg %p57
      %p64 = scmp.eq.s32.totalorder %s34, 3
      %p65 = por %p63, %p64
      %p66 = scmp.ne.s32.totalorder %s58, %s61
      %p67 = scmp.eq.s32.totalorder %s34, 0
      %p68 = por %p66, %p67
      %p69 = scmp.ne.s32.totalorder %s58, %s61
      %p70 = scmp.eq.s32.totalorder %s39, 3
      %p71 = por %p69, %p70
      %p72 = scmp.ne.s32.totalorder %s61, %s62
      %p73 = scmp.eq.s32.totalorder %s39, 0
      %p74 = por %p72, %p73
      %p75 = scmp.ne.s32.totalorder %s61, %s62
      %p76 = scmp.eq.s32.totalorder %s40, 3
      %p77 = por %p75, %p76
      %p79 = scmp.ne.s32.totalorder %s62, %s78
      %p80 = scmp.eq.s32.totalorder %s40, 0
      %p81 = por %p79, %p80
      %s82 = ssub.s32 %s42, %s49
      %p83 = scmp.eq.s32.totalorder %s82, 0
      %s85 = sadd.s32 %s84, 1
      %s86 = scalar_select %p83, %s84, %s85
      %p89 = pneg %p83
      %p90 = scmp.eq.s32.totalorder %s34, 3
      %p91 = por %p89, %p90
      %p92 = scmp.ne.s32.totalorder %s84, %s87
      %p93 = scmp.eq.s32.totalorder %s34, 0
      %p94 = por %p92, %p93
      %p95 = scmp.ne.s32.totalorder %s84, %s87
      %p96 = scmp.eq.s32.totalorder %s39, 3
      %p97 = por %p95, %p96
      %p98 = scmp.ne.s32.totalorder %s87, %s88
      %p99 = scmp.eq.s32.totalorder %s39, 0
      %p100 = por %p98, %p99
      %p101 = scmp.ne.s32.totalorder %s87, %s88
      %p102 = scmp.eq.s32.totalorder %s40, 3
      %p103 = por %p101, %p102
      %p105 = scmp.ne.s32.totalorder %s88, %s104
      %p106 = scmp.eq.s32.totalorder %s40, 0
      %p107 = por %p105, %p106
      %s108 = ssub.s32 %s41, %s53
      %p109 = scmp.eq.s32.totalorder %s108, 0
      %s111 = sadd.s32 %s110, 1
      %s112 = scalar_select %p109, %s110, %s111
      %p115 = pneg %p109
      %p116 = scmp.eq.s32.totalorder %s34, 3
      %p117 = por %p115, %p116
      %p118 = scmp.ne.s32.totalorder %s110, %s113
      %p119 = scmp.eq.s32.totalorder %s34, 0
      %p120 = por %p118, %p119
      %p121 = scmp.ne.s32.totalorder %s110, %s113
      %p122 = scmp.eq.s32.totalorder %s39, 3
      %p123 = por %p121, %p122
      %p124 = scmp.ne.s32.totalorder %s113, %s114
      %p125 = scmp.eq.s32.totalorder %s39, 0
      %p126 = por %p124, %p125
      %p127 = scmp.ne.s32.totalorder %s113, %s114
      %p128 = scmp.eq.s32.totalorder %s40, 3
      %p129 = por %p127, %p128
      %p131 = scmp.ne.s32.totalorder %s114, %s130
      %p132 = scmp.eq.s32.totalorder %s40, 0
      %p133 = por %p131, %p132
      %s135 = sadd.s32 %s134, 1
      %p138 = scmp.eq.s32.totalorder %s34, 3
      %p139 = scmp.ne.s32.totalorder %s134, %s136
      %p140 = scmp.eq.s32.totalorder %s34, 0
      %p141 = por %p139, %p140
      %p142 = scmp.ne.s32.totalorder %s134, %s136
      %p143 = scmp.eq.s32.totalorder %s39, 3
      %p144 = por %p142, %p143
      %p145 = scmp.ne.s32.totalorder %s136, %s137
      %p146 = scmp.eq.s32.totalorder %s39, 0
      %p147 = por %p145, %p146
      %p148 = scmp.ne.s32.totalorder %s136, %s137
      %p149 = scmp.eq.s32.totalorder %s40, 3
      %p150 = por %p148, %p149
      %p152 = scmp.ne.s32.totalorder %s137, %s151
      %p153 = scmp.eq.s32.totalorder %s40, 0
      %p154 = por %p152, %p153
      %s156 = sadd.s32 %s155, 1
      %p159 = scmp.eq.s32.totalorder %s34, 3
      %p160 = scmp.ne.s32.totalorder %s155, %s157
      %p161 = scmp.eq.s32.totalorder %s34, 0
      %p162 = por %p160, %p161
      %p163 = scmp.ne.s32.totalorder %s155, %s157
      %p164 = scmp.eq.s32.totalorder %s39, 3
      %p165 = por %p163, %p164
      %p166 = scmp.ne.s32.totalorder %s157, %s158
      %p167 = scmp.eq.s32.totalorder %s39, 0
      %p168 = por %p166, %p167
      %p169 = scmp.ne.s32.totalorder %s157, %s158
      %p170 = scmp.eq.s32.totalorder %s40, 3
      %p171 = por %p169, %p170
      %p173 = scmp.ne.s32.totalorder %s158, %s172
      %p174 = scmp.eq.s32.totalorder %s40, 0
      %p175 = por %p173, %p174
      %s177 = sadd.s32 %s176, 1
      %p180 = scmp.eq.s32.totalorder %s34, 3
      %p181 = scmp.ne.s32.totalorder %s176, %s178
      %p182 = scmp.eq.s32.totalorder %s34, 0
      %p183 = por %p181, %p182
      %p184 = scmp.ne.s32.totalorder %s176, %s178
      %p185 = scmp.eq.s32.totalorder %s39, 3
      %p186 = por %p184, %p185
      %p187 = scmp.ne.s32.totalorder %s178, %s179
      %p188 = scmp.eq.s32.totalorder %s39, 0
      %p189 = por %p187, %p188
      %p190 = scmp.ne.s32.totalorder %s178, %s179
      %p191 = scmp.eq.s32.totalorder %s40, 3
      %p192 = por %p190, %p191
      %p194 = scmp.ne.s32.totalorder %s179, %s193
      %p195 = scmp.eq.s32.totalorder %s40, 0
      %p196 = por %p194, %p195
      %s198 = sadd.s32 %s197, 1
      %p201 = scmp.eq.s32.totalorder %s34, 3
      %p202 = scmp.ne.s32.totalorder %s197, %s199
      %p203 = scmp.eq.s32.totalorder %s34, 0
      %p204 = por %p202, %p203
      %p205 = scmp.ne.s32.totalorder %s197, %s199
      %p206 = scmp.eq.s32.totalorder %s39, 3
      %p207 = por %p205, %p206
      %p208 = scmp.ne.s32.totalorder %s199, %s200
      %p209 = scmp.eq.s32.totalorder %s39, 0
      %p210 = por %p208, %p209
      %p211 = scmp.ne.s32.totalorder %s199, %s200
      %p212 = scmp.eq.s32.totalorder %s40, 3
      %p213 = por %p211, %p212
      %p215 = scmp.ne.s32.totalorder %s200, %s214
      %p216 = scmp.eq.s32.totalorder %s40, 0
      %p217 = por %p215, %p216
      %s219 = sadd.s32 %s218, 1
      %p222 = scmp.eq.s32.totalorder %s34, 3
      %p223 = scmp.ne.s32.totalorder %s218, %s220
      %p224 = scmp.eq.s32.totalorder %s34, 0
      %p225 = por %p223, %p224
      %p226 = scmp.ne.s32.totalorder %s218, %s220
      %p227 = scmp.eq.s32.totalorder %s39, 3
      %p228 = por %p226, %p227
      %p229 = scmp.ne.s32.totalorder %s220, %s221
      %p230 = scmp.eq.s32.totalorder %s39, 0
      %p231 = por %p229, %p230
      %p232 = scmp.ne.s32.totalorder %s220, %s221
      %p233 = scmp.eq.s32.totalorder %s40, 3
      %p234 = por %p232, %p233
      %p236 = scmp.ne.s32.totalorder %s221, %s235
      %p237 = scmp.eq.s32.totalorder %s40, 0
      %p238 = por %p236, %p237
      %s240 = sadd.s32 %s239, 1
      %p243 = scmp.eq.s32.totalorder %s34, 3
      %p244 = scmp.ne.s32.totalorder %s239, %s241
      %p245 = scmp.eq.s32.totalorder %s34, 0
      %p246 = por %p244, %p245
      %p247 = scmp.ne.s32.totalorder %s239, %s241
      %p248 = scmp.eq.s32.totalorder %s39, 3
      %p249 = por %p247, %p248
      %p250 = scmp.ne.s32.totalorder %s241, %s242
      %p251 = scmp.eq.s32.totalorder %s39, 0
      %p252 = por %p250, %p251
      %p253 = scmp.ne.s32.totalorder %s241, %s242
      %p254 = scmp.eq.s32.totalorder %s40, 3
      %p255 = por %p253, %p254
      %p257 = scmp.ne.s32.totalorder %s242, %s256
      %p258 = scmp.eq.s32.totalorder %s40, 0
      %p259 = por %p257, %p258
      %s261 = sadd.s32 %s260, 1
      %p264 = scmp.eq.s32.totalorder %s34, 3
      %p265 = scmp.ne.s32.totalorder %s260, %s262
      %p266 = scmp.eq.s32.totalorder %s34, 0
      %p267 = por %p265, %p266
      %p268 = scmp.ne.s32.totalorder %s260, %s262
      %p269 = scmp.eq.s32.totalorder %s39, 3
      %p270 = por %p268, %p269
      %p271 = scmp.ne.s32.totalorder %s262, %s263
      %p272 = scmp.eq.s32.totalorder %s39, 0
      %p273 = por %p271, %p272
      %p274 = scmp.ne.s32.totalorder %s262, %s263
      %p275 = scmp.eq.s32.totalorder %s40, 3
      %p276 = por %p274, %p275
      %p278 = scmp.ne.s32.totalorder %s263, %s277
      %p279 = scmp.eq.s32.totalorder %s40, 0
      %p280 = por %p278, %p279
      %s282 = sadd.s32 %s281, 1
      %p285 = scmp.eq.s32.totalorder %s34, 3
      %p286 = scmp.ne.s32.totalorder %s281, %s283
      %p287 = scmp.eq.s32.totalorder %s34, 0
      %p288 = por %p286, %p287
      %p289 = scmp.ne.s32.totalorder %s281, %s283
      %p290 = scmp.eq.s32.totalorder %s39, 3
      %p291 = por %p289, %p290
      %p292 = scmp.ne.s32.totalorder %s283, %s284
      %p293 = scmp.eq.s32.totalorder %s39, 0
      %p294 = por %p292, %p293
      %p295 = scmp.ne.s32.totalorder %s283, %s284
      %p296 = scmp.eq.s32.totalorder %s40, 3
      %p297 = por %p295, %p296
      %p299 = scmp.ne.s32.totalorder %s284, %s298
      %p300 = scmp.eq.s32.totalorder %s40, 0
      %p301 = por %p299, %p300
      %s303 = sadd.s32 %s302, 1
      %p306 = scmp.eq.s32.totalorder %s34, 3
      %p307 = scmp.ne.s32.totalorder %s302, %s304
      %p308 = scmp.eq.s32.totalorder %s34, 0
      %p309 = por %p307, %p308
      %p310 = scmp.ne.s32.totalorder %s302, %s304
      %p311 = scmp.eq.s32.totalorder %s39, 3
      %p312 = por %p310, %p311
      %p313 = scmp.ne.s32.totalorder %s304, %s305
      %p314 = scmp.eq.s32.totalorder %s39, 0
      %p315 = por %p313, %p314
      %p316 = scmp.ne.s32.totalorder %s304, %s305
      %p317 = scmp.eq.s32.totalorder %s40, 3
      %p318 = por %p316, %p317
      %p320 = scmp.ne.s32.totalorder %s305, %s319
      %p321 = scmp.eq.s32.totalorder %s40, 0
      %p322 = por %p320, %p321
      %s324 = sadd.s32 %s323, 1
      %p327 = scmp.eq.s32.totalorder %s34, 3
      %p328 = scmp.ne.s32.totalorder %s323, %s325
      %p329 = scmp.eq.s32.totalorder %s34, 0
      %p330 = por %p328, %p329
      %p331 = scmp.ne.s32.totalorder %s323, %s325
      %p332 = scmp.eq.s32.totalorder %s39, 3
      %p333 = por %p331, %p332
      %p334 = scmp.ne.s32.totalorder %s325, %s326
      %p335 = scmp.eq.s32.totalorder %s39, 0
      %p336 = por %p334, %p335
      %p337 = scmp.ne.s32.totalorder %s325, %s326
      %p338 = scmp.eq.s32.totalorder %s40, 3
      %p339 = por %p337, %p338
      %p341 = scmp.ne.s32.totalorder %s326, %s340
      %p342 = scmp.eq.s32.totalorder %s40, 0
      %p343 = por %p341, %p342
      %s345 = sadd.s32 %s344, 1
      %p348 = scmp.eq.s32.totalorder %s34, 3
      %p349 = scmp.ne.s32.totalorder %s344, %s346
      %p350 = scmp.eq.s32.totalorder %s34, 0
      %p351 = por %p349, %p350
      %p352 = scmp.ne.s32.totalorder %s344, %s346
      %p353 = scmp.eq.s32.totalorder %s39, 3
      %p354 = por %p352, %p353
      %p355 = scmp.ne.s32.totalorder %s346, %s347
      %p356 = scmp.eq.s32.totalorder %s39, 0
      %p357 = por %p355, %p356
      %p358 = scmp.ne.s32.totalorder %s346, %s347
      %p359 = scmp.eq.s32.totalorder %s40, 3
      %p360 = por %p358, %p359
      %p362 = scmp.ne.s32.totalorder %s347, %s361
      %p363 = scmp.eq.s32.totalorder %s40, 0
      %p364 = por %p362, %p363
      %s366 = sadd.s32 %s365, 1
      %p369 = scmp.eq.s32.totalorder %s34, 3
      %p370 = scmp.ne.s32.totalorder %s365, %s367
      %p371 = scmp.eq.s32.totalorder %s34, 0
      %p372 = por %p370, %p371
      %p373 = scmp.ne.s32.totalorder %s365, %s367
      %p374 = scmp.eq.s32.totalorder %s39, 3
      %p375 = por %p373, %p374
      %p376 = scmp.ne.s32.totalorder %s367, %s368
      %p377 = scmp.eq.s32.totalorder %s39, 0
      %p378 = por %p376, %p377
      %p379 = scmp.ne.s32.totalorder %s367, %s368
      %p380 = scmp.eq.s32.totalorder %s40, 3
      %p381 = por %p379, %p380
      %p383 = scmp.ne.s32.totalorder %s368, %s382
      %p384 = scmp.eq.s32.totalorder %s40, 0
      %p385 = por %p383, %p384
      %s387 = sadd.s32 %s386, 1
      %p390 = scmp.eq.s32.totalorder %s34, 3
      %p391 = scmp.ne.s32.totalorder %s386, %s388
      %p392 = scmp.eq.s32.totalorder %s34, 0
      %p393 = por %p391, %p392
      %p394 = scmp.ne.s32.totalorder %s386, %s388
      %p395 = scmp.eq.s32.totalorder %s39, 3
      %p396 = por %p394, %p395
      %p397 = scmp.ne.s32.totalorder %s388, %s389
      %p398 = scmp.eq.s32.totalorder %s39, 0
      %p399 = por %p397, %p398
      %p400 = scmp.ne.s32.totalorder %s388, %s389
      %p401 = scmp.eq.s32.totalorder %s40, 3
      %p402 = por %p400, %p401
      %p404 = scmp.ne.s32.totalorder %s389, %s403
      %p405 = scmp.eq.s32.totalorder %s40, 0
      %p406 = por %p404, %p405
      %s408 = sadd.s32 %s407, 1
      %p411 = scmp.eq.s32.totalorder %s34, 3
      %p412 = scmp.ne.s32.totalorder %s407, %s409
      %p413 = scmp.eq.s32.totalorder %s34, 0
      %p414 = por %p412, %p413
      %p415 = scmp.ne.s32.totalorder %s407, %s409
      %p416 = scmp.eq.s32.totalorder %s39, 3
      %p417 = por %p415, %p416
      %p418 = scmp.ne.s32.totalorder %s409, %s410
      %p419 = scmp.eq.s32.totalorder %s39, 0
      %p420 = por %p418, %p419
      %p421 = scmp.ne.s32.totalorder %s409, %s410
      %p422 = scmp.eq.s32.totalorder %s40, 3
      %p423 = por %p421, %p422
      %p425 = scmp.ne.s32.totalorder %s410, %s424
      %p426 = scmp.eq.s32.totalorder %s40, 0
      %p427 = por %p425, %p426
      %s429 = sadd.s32 %s428, 1
      %p432 = scmp.eq.s32.totalorder %s34, 3
      %p433 = scmp.ne.s32.totalorder %s428, %s430
      %p434 = scmp.eq.s32.totalorder %s34, 0
      %p435 = por %p433, %p434
      %p436 = scmp.ne.s32.totalorder %s428, %s430
      %p437 = scmp.eq.s32.totalorder %s39, 3
      %p438 = por %p436, %p437
      %p439 = scmp.ne.s32.totalorder %s430, %s431
      %p440 = scmp.eq.s32.totalorder %s39, 0
      %p441 = por %p439, %p440
      %p442 = scmp.ne.s32.totalorder %s430, %s431
      %p443 = scmp.eq.s32.totalorder %s40, 3
      %p444 = por %p442, %p443
      %p446 = scmp.ne.s32.totalorder %s431, %s445
      %p447 = scmp.eq.s32.totalorder %s40, 0
      %p448 = por %p446, %p447
      %p449 = scmp.le.s32.totalorder 1, %s34
      %p450 = scmp.lt.s32.totalorder %s34, 5
      %p451 = pnand %p449, %p450
      %p452 = pneg %p451
      // Predicated region
      $region9: #{tpu_custom_call.1} parent=5 // pred_check
        _
      $region10: #{tpu_custom_call.1} parent=5 // pred_check_branch
        %454 = sbr.rel (%p451) target = $region12
      $region11: #{tpu_custom_call.1} parent=5 // pred_region
        %s455 = ssub.s32 %s34, 1
        // Predicated region
        $region13: #{tpu_custom_call.1} parent=11 // pred_check
          %p456 = pneg %p147
        $region14: #{tpu_custom_call.1} parent=11 // pred_check_branch
          %458 = sbr.rel (%p456) target = $region16
        $region15: #{tpu_custom_call.1} parent=11 // pred_region
          %s460 = ssub.s32 2048, 2048
          %461 = vsyncadd [#allocation8], %s460
          %s462 = sshll.u32 [#allocation9], 4
          %s463 = int_to_ptr.vmem [resolvable:$true] %s462
          %468 = dma.hbm_to_vmem [thread:$0]  %s3, 2048, %s463, [#allocation8], 128, 128, 8
        $region16: #{tpu_custom_call.1} parent=11 // pred_fallthru
          _
        // Predicated region
        $region17: #{tpu_custom_call.1} parent=11 // pred_check
          %p469 = pneg %p168
        $region18: #{tpu_custom_call.1} parent=11 // pred_check_branch
          %471 = sbr.rel (%p469) target = $region20
        $region19: #{tpu_custom_call.1} parent=11 // pred_region
          %s473 = ssub.s32 16, 16
          %474 = vsyncadd [#allocation11], %s473
          %s476 = sshll.u32 [#allocation10], 4
          %s477 = int_to_ptr.vmem [resolvable:$true] %s476
          %479 = dma.hbm_to_vmem [thread:$0]  %s4, 16, %s477, [#allocation11]
        $region20: #{tpu_custom_call.1} parent=11 // pred_fallthru
          _
        // Predicated region
        $region21: #{tpu_custom_call.1} parent=11 // pred_check
          %p480 = pneg %p189
        $region22: #{tpu_custom_call.1} parent=11 // pred_check_branch
          %482 = sbr.rel (%p480) target = $region24
        $region23: #{tpu_custom_call.1} parent=11 // pred_region
          %s484 = ssub.s32 8192, 8192
          %485 = vsyncadd [#allocation11], %s484
          %s486 = sshll.u32 [#allocation12], 4
          %s487 = int_to_ptr.vmem [resolvable:$true] %s486
          %492 = dma.hbm_to_vmem [thread:$0]  %s5, 8192, %s487, [#allocation11], 512, 512, 32
        $region24: #{tpu_custom_call.1} parent=11 // pred_fallthru
          _
        // Predicated region
        $region25: #{tpu_custom_call.1} parent=11 // pred_check
          %p493 = pneg %p210
        $region26: #{tpu_custom_call.1} parent=11 // pred_check_branch
          %495 = sbr.rel (%p493) target = $region28
        $region27: #{tpu_custom_call.1} parent=11 // pred_region
          _
        $region28: #{tpu_custom_call.1} parent=11 // pred_fallthru
          _
        // Predicated region
        $region29: #{tpu_custom_call.1} parent=11 // pred_check
          %p496 = pneg %p231
        $region30: #{tpu_custom_call.1} parent=11 // pred_check_branch
          %498 = sbr.rel (%p496) target = $region32
        $region31: #{tpu_custom_call.1} parent=11 // pred_region
          %s500 = ssub.s32 16384, 16384
          %501 = vsyncadd [#allocation14], %s500
          %s502 = sshll.u32 [#allocation13], 4
          %s503 = int_to_ptr.vmem [resolvable:$true] %s502
          %508 = dma.hbm_to_vmem [thread:$0]  %s7, 16384, %s503, [#allocation14], 256, 256, 16
        $region32: #{tpu_custom_call.1} parent=11 // pred_fallthru
          _
        // Predicated region
        $region33: #{tpu_custom_call.1} parent=11 // pred_check
          %p509 = pneg %p252
        $region34: #{tpu_custom_call.1} parent=11 // pred_check_branch
          %511 = sbr.rel (%p509) target = $region36
        $region35: #{tpu_custom_call.1} parent=11 // pred_region
          _
        $region36: #{tpu_custom_call.1} parent=11 // pred_fallthru
          _
        // Predicated region
        $region37: #{tpu_custom_call.1} parent=11 // pred_check
          %p512 = pneg %p273
        $region38: #{tpu_custom_call.1} parent=11 // pred_check_branch
          %514 = sbr.rel (%p512) target = $region40
        $region39: #{tpu_custom_call.1} parent=11 // pred_region
          _
        $region40: #{tpu_custom_call.1} parent=11 // pred_fallthru
          _
        // Predicated region
        $region41: #{tpu_custom_call.1} parent=11 // pred_check
          %p515 = pneg %p294
        $region42: #{tpu_custom_call.1} parent=11 // pred_check_branch
          %517 = sbr.rel (%p515) target = $region44
        $region43: #{tpu_custom_call.1} parent=11 // pred_region
          _
        $region44: #{tpu_custom_call.1} parent=11 // pred_fallthru
          _
        // Predicated region
        $region45: #{tpu_custom_call.1} parent=11 // pred_check
          %p518 = pneg %p315
        $region46: #{tpu_custom_call.1} parent=11 // pred_check_branch
          %520 = sbr.rel (%p518) target = $region48
        $region47: #{tpu_custom_call.1} parent=11 // pred_region
          _
        $region48: #{tpu_custom_call.1} parent=11 // pred_fallthru
          _
        // Predicated region
        $region49: #{tpu_custom_call.1} parent=11 // pred_check
          %p521 = pneg %p336
        $region50: #{tpu_custom_call.1} parent=11 // pred_check_branch
          %523 = sbr.rel (%p521) target = $region52
        $region51: #{tpu_custom_call.1} parent=11 // pred_region
          _
        $region52: #{tpu_custom_call.1} parent=11 // pred_fallthru
          _
        // Predicated region
        $region53: #{tpu_custom_call.1} parent=11 // pred_check
          %p524 = pneg %p357
        $region54: #{tpu_custom_call.1} parent=11 // pred_check_branch
          %526 = sbr.rel (%p524) target = $region56
        $region55: #{tpu_custom_call.1} parent=11 // pred_region
          _
        $region56: #{tpu_custom_call.1} parent=11 // pred_fallthru
          _
        // Predicated region
        $region57: #{tpu_custom_call.1} parent=11 // pred_check
          %p527 = pneg %p378
        $region58: #{tpu_custom_call.1} parent=11 // pred_check_branch
          %529 = sbr.rel (%p527) target = $region60
        $region59: #{tpu_custom_call.1} parent=11 // pred_region
          %s531 = ssub.s32 4096, 4096
          %532 = vsyncadd [#allocation14], %s531
          %s533 = sshll.u32 [#allocation15], 4
          %s534 = int_to_ptr.vmem [resolvable:$true] %s533
          %539 = dma.hbm_to_vmem [thread:$0]  %s14, 4096, %s534, [#allocation14], 128, 128, 8
        $region60: #{tpu_custom_call.1} parent=11 // pred_fallthru
          _
        // Predicated region
        $region61: #{tpu_custom_call.1} parent=11 // pred_check
          %p540 = pneg %p399
        $region62: #{tpu_custom_call.1} parent=11 // pred_check_branch
          %542 = sbr.rel (%p540) target = $region64
        $region63: #{tpu_custom_call.1} parent=11 // pred_region
          _
        $region64: #{tpu_custom_call.1} parent=11 // pred_fallthru
          _
      $region12: #{tpu_custom_call.1} parent=5 // pred_fallthru
        _
      %p543 = scmp.lt.s32.totalorder %s34, 4
      // Predicated region
      $region65: #{tpu_custom_call.1} parent=5 // pred_check
        %p544 = pneg %p543
      $region66: #{tpu_custom_call.1} parent=5 // pred_check_branch
        %546 = sbr.rel (%p544) target = $region68
      $region67: #{tpu_custom_call.1} parent=5 // pred_region
        // Predicated region
        $region69: #{tpu_custom_call.1} parent=67 // pred_check
          %p547 = pneg %p68
        $region70: #{tpu_custom_call.1} parent=67 // pred_check_branch
          %549 = sbr.rel (%p547) target = $region72
        $region71: #{tpu_custom_call.1} parent=67 // pred_region
          %s550 = sand.u32 %s58, 1
          %s551 = scalar_lea.sflag [#allocation5], %s550
          %s552 = sand.u32 %s58, 1
          %s553 = smul.addr %s552, 64
          %s554 = scalar_lea.vmem [#allocation4], %s553
          %s555 = smul.u32 16, %s41
          %s557 = ssub.s32 1024, 1024
          %558 = vsyncadd %s551, %s557
          %s559 = smul.addr %s555, 2
          %s560 = sadd.s32 %s42, %s559
          %s561 = smul.addr %s560, 64
          %s562 = scalar_lea.hbm %s0, %s561
          %s563 = sshll.u32 %s554, 4
          %s564 = int_to_ptr.vmem [resolvable:$true] %s563
          %569 = dma.hbm_to_vmem [thread:$0]  %s562, 1024, %s564, %s551, 128, 64, 4
        $region72: #{tpu_custom_call.1} parent=67 // pred_fallthru
          _
        // Predicated region
        $region73: #{tpu_custom_call.1} parent=67 // pred_check
          %p570 = pneg %p94
        $region74: #{tpu_custom_call.1} parent=67 // pred_check_branch
          %572 = sbr.rel (%p570) target = $region76
        $region75: #{tpu_custom_call.1} parent=67 // pred_region
          %s573 = sand.u32 %s34, 1
          %s574 = scalar_lea.sflag [#allocation8], %s573
          %s575 = sand.u32 %s84, 1
          %s576 = smul.addr %s575, 64
          %s577 = scalar_lea.vmem [#allocation7], %s576
          %s578 = smul.u32 16, %s42
          %s580 = ssub.s32 1024, 1024
          %581 = vsyncadd %s574, %s580
          %s582 = smul.addr %s578, 64
          %s583 = scalar_lea.hbm %s1, %s582
          %s584 = sshll.u32 %s577, 4
          %s585 = int_to_ptr.vmem [resolvable:$true] %s584
          %590 = dma.hbm_to_vmem [thread:$0]  %s583, 1024, %s585, %s574, 64, 64, 4
        $region76: #{tpu_custom_call.1} parent=67 // pred_fallthru
          _
        // Predicated region
        $region77: #{tpu_custom_call.1} parent=67 // pred_check
          %p591 = pneg %p120
        $region78: #{tpu_custom_call.1} parent=67 // pred_check_branch
          %593 = sbr.rel (%p591) target = $region80
        $region79: #{tpu_custom_call.1} parent=67 // pred_region
          %p594 = scmp.lt.s32.totalorder %s41, 1
          %s595 = scalar_select %p594, %s41, 1
          %s596 = smul.addr %s595, 2
          %s597 = scalar_lea.vmem %s2, %s596
        $region80: #{tpu_custom_call.1} parent=67 // pred_fallthru
          _
      $region68: #{tpu_custom_call.1} parent=5 // pred_fallthru
        _
      %p598 = scmp.le.s32.totalorder 1, %s34
      %p599 = scmp.lt.s32.totalorder %s34, 5
      %p600 = pnand %p598, %p599
      %p601 = pneg %p600
      // Predicated region
      $region81: #{tpu_custom_call.1} parent=5 // pred_check
        _
      $region82: #{tpu_custom_call.1} parent=5 // pred_check_branch
        %603 = sbr.rel (%p600) target = $region84
      $region83: #{tpu_custom_call.1} parent=5 // pred_region
        %s604 = ssub.s32 %s34, 1
        %s605 = sand.u32 %s61, 1
        %s606 = scalar_lea.sflag [#allocation5], %s605
        %s607 = sand.u32 %s61, 1
        %s608 = smul.addr %s607, 64
        %s609 = scalar_lea.vmem [#allocation4], %s608
        // Predicated region
        $region85: #{tpu_custom_call.1} parent=83 // pred_check
          %p610 = pneg %p74
        $region86: #{tpu_custom_call.1} parent=83 // pred_check_branch
          %612 = sbr.rel (%p610) target = $region88
        $region87: #{tpu_custom_call.1} parent=83 // pred_region
          %613 = dma.done %s606, 1024
        $region88: #{tpu_custom_call.1} parent=83 // pred_fallthru
          _
        %s614 = sand.u32 %s39, 1
        %s615 = scalar_lea.sflag [#allocation8], %s614
        %s616 = sand.u32 %s87, 1
        %s617 = smul.addr %s616, 64
        %s618 = scalar_lea.vmem [#allocation7], %s617
        // Predicated region
        $region89: #{tpu_custom_call.1} parent=83 // pred_check
          %p619 = pneg %p100
        $region90: #{tpu_custom_call.1} parent=83 // pred_check_branch
          %621 = sbr.rel (%p619) target = $region92
        $region91: #{tpu_custom_call.1} parent=83 // pred_region
          %622 = dma.done %s615, 1024
        $region92: #{tpu_custom_call.1} parent=83 // pred_fallthru
          _
        // Predicated region
        $region93: #{tpu_custom_call.1} parent=83 // pred_check
          %p623 = pneg %p147
        $region94: #{tpu_custom_call.1} parent=83 // pred_check_branch
          %625 = sbr.rel (%p623) target = $region96
        $region95: #{tpu_custom_call.1} parent=83 // pred_region
          %626 = dma.done [#allocation8], 2048
        $region96: #{tpu_custom_call.1} parent=83 // pred_fallthru
          _
        // Predicated region
        $region97: #{tpu_custom_call.1} parent=83 // pred_check
          %p627 = pneg %p168
        $region98: #{tpu_custom_call.1} parent=83 // pred_check_branch
          %629 = sbr.rel (%p627) target = $region100
        $region99: #{tpu_custom_call.1} parent=83 // pred_region
          %630 = dma.done [#allocation11], 16
        $region100: #{tpu_custom_call.1} parent=83 // pred_fallthru
          _
        // Predicated region
        $region101: #{tpu_custom_call.1} parent=83 // pred_check
          %p631 = pneg %p189
        $region102: #{tpu_custom_call.1} parent=83 // pred_check_branch
          %633 = sbr.rel (%p631) target = $region104
        $region103: #{tpu_custom_call.1} parent=83 // pred_region
          %634 = dma.done [#allocation11], 8192
        $region104: #{tpu_custom_call.1} parent=83 // pred_fallthru
          _
        // Predicated region
        $region105: #{tpu_custom_call.1} parent=83 // pred_check
          %p635 = pneg %p231
        $region106: #{tpu_custom_call.1} parent=83 // pred_check_branch
          %637 = sbr.rel (%p635) target = $region108
        $region107: #{tpu_custom_call.1} parent=83 // pred_region
          %638 = dma.done [#allocation14], 16384
        $region108: #{tpu_custom_call.1} parent=83 // pred_fallthru
          _
        // Predicated region
        $region109: #{tpu_custom_call.1} parent=83 // pred_check
          %p639 = pneg %p378
        $region110: #{tpu_custom_call.1} parent=83 // pred_check_branch
          %641 = sbr.rel (%p639) target = $region112
        $region111: #{tpu_custom_call.1} parent=83 // pred_region
          %642 = dma.done [#allocation14], 4096
        $region112: #{tpu_custom_call.1} parent=83 // pred_fallthru
          _
        %s643 = sand.u32 %s61, 1
        %s644 = scalar_lea.sflag [#allocation5], %s643
        %s645 = sand.u32 %s61, 1
        %s646 = smul.addr %s645, 64
        %s647 = scalar_lea.vmem [#allocation4], %s646
        %p648 = pneg %p74
        %p649 = pneg %p71
        %s650 = sand.u32 %s39, 1
        %s651 = scalar_lea.sflag [#allocation8], %s650
        %s652 = sand.u32 %s87, 1
        %s653 = smul.addr %s652, 64
        %s654 = scalar_lea.vmem [#allocation7], %s653
        %p655 = pneg %p100
        %p656 = pneg %p97
        %p657 = scmp.lt.s32.totalorder %s43, 1
        %s658 = scalar_select %p657, %s43, 1
        %s659 = smul.addr %s658, 2
        %s660 = scalar_lea.vmem %s2, %s659
        %p661 = pneg %p126
        %p662 = pneg %p123
        %p663 = pneg %p147
        %p664 = pneg %p144
        %p665 = pneg %p168
        %p666 = pneg %p165
        %p667 = pneg %p189
        %p668 = pneg %p186
        %p669 = pneg %p210
        %p670 = pneg %p207
        %p671 = pneg %p231
        %p672 = pneg %p228
        %p673 = pneg %p252
        %p674 = pneg %p249
        %p675 = pneg %p273
        %p676 = pneg %p270
        %p677 = pneg %p294
        %p678 = pneg %p291
        %p679 = pneg %p315
        %p680 = pneg %p312
        %p681 = pneg %p336
        %p682 = pneg %p333
        %p683 = pneg %p357
        %p684 = pneg %p354
        %p685 = pneg %p378
        %p686 = pneg %p375
        %p687 = pneg %p399
        %p688 = pneg %p396
        %p689 = pneg %p420
        %p690 = pneg %p417
        %p691 = pneg %p441
        %p692 = pneg %p438
        %s693 = smul.u32 16, %s43
        %s694 = smul.u32 16, %s44
        %p695 = scmp.lt.s32.totalorder %s43, 1
        %s696 = scalar_select %p695, %s43, 1
        %s697 = smul.addr %s696, 2
        %s698 = scalar_lea.vmem %s2, %s697
        %p700 = scmp.eq.s32.totalorder %s43, 0
        %p701 = scmp.eq.s32.totalorder %s44, 0
        %p702 = pnand %p700, %p701
        %p703 = pneg %p702
        // Predicated region
        $region113: #{tpu_custom_call.1} parent=83 // pred_check
          _
        $region114: #{tpu_custom_call.1} parent=83 // pred_check_branch
          %705 = sbr.rel (%p702) target = $region116
        $region115: #{tpu_custom_call.1} parent=83 // pred_region
          %706 = vst [vmem:[#allocation3] sm:$0xff] 0.0
        $region116: #{tpu_custom_call.1} parent=83 // pred_fallthru
          _
        // Predicated region
        $region117: #{tpu_custom_call.1} parent=83 // pred_check
          %p707 = pneg %p701
        $region118: #{tpu_custom_call.1} parent=83 // pred_check_branch
          %709 = sbr.rel (%p707) target = $region120
        $region119: #{tpu_custom_call.1} parent=83 // pred_region
          %710 = vst [vmem:[#allocation2] sm:$0xff] 0.0
          %711 = vst [vmem:[#allocation2 + $0x8] sm:$0xff] 0.0
          %712 = vst [vmem:[#allocation2 + $0x10] sm:$0xff] 0.0
          %713 = vst [vmem:[#allocation2 + $0x18] sm:$0xff] 0.0
          %714 = vst [vmem:[#allocation2 + $0x20] sm:$0xff] 0.0
          %715 = vst [vmem:[#allocation2 + $0x28] sm:$0xff] 0.0
          %716 = vst [vmem:[#allocation2 + $0x30] sm:$0xff] 0.0
          %717 = vst [vmem:[#allocation2 + $0x38] sm:$0xff] 0.0
          %718 = vst [vmem:[#allocation2 + $0x40] sm:$0xff] 0.0
          %719 = vst [vmem:[#allocation2 + $0x48] sm:$0xff] 0.0
          %720 = vst [vmem:[#allocation2 + $0x50] sm:$0xff] 0.0
          %721 = vst [vmem:[#allocation2 + $0x58] sm:$0xff] 0.0
          %722 = vst [vmem:[#allocation2 + $0x60] sm:$0xff] 0.0
          %723 = vst [vmem:[#allocation2 + $0x68] sm:$0xff] 0.0
          %724 = vst [vmem:[#allocation2 + $0x70] sm:$0xff] 0.0
          %725 = vst [vmem:[#allocation2 + $0x78] sm:$0xff] 0.0
        $region120: #{tpu_custom_call.1} parent=83 // pred_fallthru
          _
        %v726 = vld [vmem:[#allocation2] sm:$0xff]
        %v727 = vld [vmem:[#allocation2 + $0x8] sm:$0xff]
        %v728 = vld [vmem:[#allocation2 + $0x10] sm:$0xff]
        %v729 = vld [vmem:[#allocation2 + $0x18] sm:$0xff]
        %v730 = vld [vmem:[#allocation2 + $0x20] sm:$0xff]
        %v731 = vld [vmem:[#allocation2 + $0x28] sm:$0xff]
        %v732 = vld [vmem:[#allocation2 + $0x30] sm:$0xff]
        %v733 = vld [vmem:[#allocation2 + $0x38] sm:$0xff]
        %v734 = vld [vmem:[#allocation2 + $0x40] sm:$0xff]
        %v735 = vld [vmem:[#allocation2 + $0x48] sm:$0xff]
        %v736 = vld [vmem:[#allocation2 + $0x50] sm:$0xff]
        %v737 = vld [vmem:[#allocation2 + $0x58] sm:$0xff]
        %v738 = vld [vmem:[#allocation2 + $0x60] sm:$0xff]
        %v739 = vld [vmem:[#allocation2 + $0x68] sm:$0xff]
        %v740 = vld [vmem:[#allocation2 + $0x70] sm:$0xff]
        %v741 = vld [vmem:[#allocation2 + $0x78] sm:$0xff]
        %v742 = vld [vmem:[%s609] sm:$0xf]
        %v743 = vld [vmem:[%s609 + $0x4] sm:$0xf]
        %v744 = vld [vmem:[%s609 + $0x8] sm:$0xf]
        %v745 = vld [vmem:[%s609 + $0xc] sm:$0xf]
        %v746 = vld [vmem:[%s609 + $0x10] sm:$0xf]
        %v747 = vld [vmem:[%s609 + $0x14] sm:$0xf]
        %v748 = vld [vmem:[%s609 + $0x18] sm:$0xf]
        %v749 = vld [vmem:[%s609 + $0x1c] sm:$0xf]
        %v750 = vld [vmem:[%s609 + $0x20] sm:$0xf]
        %v751 = vld [vmem:[%s609 + $0x24] sm:$0xf]
        %v752 = vld [vmem:[%s609 + $0x28] sm:$0xf]
        %v753 = vld [vmem:[%s609 + $0x2c] sm:$0xf]
        %v754 = vld [vmem:[%s609 + $0x30] sm:$0xf]
        %v755 = vld [vmem:[%s609 + $0x34] sm:$0xf]
        %v756 = vld [vmem:[%s609 + $0x38] sm:$0xf]
        %v757 = vld [vmem:[%s609 + $0x3c] sm:$0xf]
        %v758 = vld [vmem:[%s618] sm:$0xf]
        %v759 = vld [vmem:[%s618 + $0x4] sm:$0xf]
        %v760 = vld [vmem:[%s618 + $0x8] sm:$0xf]
        %v761 = vld [vmem:[%s618 + $0xc] sm:$0xf]
        %v762 = vld [vmem:[%s618 + $0x10] sm:$0xf]
        %v763 = vld [vmem:[%s618 + $0x14] sm:$0xf]
        %v764 = vld [vmem:[%s618 + $0x18] sm:$0xf]
        %v765 = vld [vmem:[%s618 + $0x1c] sm:$0xf]
        %v766 = vld [vmem:[%s618 + $0x20] sm:$0xf]
        %v767 = vld [vmem:[%s618 + $0x24] sm:$0xf]
        %v768 = vld [vmem:[%s618 + $0x28] sm:$0xf]
        %v769 = vld [vmem:[%s618 + $0x2c] sm:$0xf]
        %v770 = vld [vmem:[%s618 + $0x30] sm:$0xf]
        %v771 = vld [vmem:[%s618 + $0x34] sm:$0xf]
        %v772 = vld [vmem:[%s618 + $0x38] sm:$0xf]
        %v773 = vld [vmem:[%s618 + $0x3c] sm:$0xf]
        %v790 = vunpack.c.l.b16 %v742
        %v791 = vunpack.c.l.b16 %v743
        %v792 = vunpack.c.l.b16 %v744
        %v793 = vunpack.c.l.b16 %v745
        %v794 = vunpack.c.l.b16 %v746
        %v795 = vunpack.c.l.b16 %v747
        %v796 = vunpack.c.l.b16 %v748
        %v797 = vunpack.c.l.b16 %v749
        %v798 = vunpack.c.l.b16 %v750
        %v799 = vunpack.c.l.b16 %v751
        %v800 = vunpack.c.l.b16 %v752
        %v801 = vunpack.c.l.b16 %v753
        %v802 = vunpack.c.l.b16 %v754
        %v803 = vunpack.c.l.b16 %v755
        %v804 = vunpack.c.l.b16 %v756
        %v805 = vunpack.c.l.b16 %v757
        %v806 = vpack.c.b16 %v791, %v790
        %v807 = vpack.c.b16 %v793, %v792
        %v808 = vpack.c.b16 %v795, %v794
        %v809 = vpack.c.b16 %v797, %v796
        %v810 = vpack.c.b16 %v799, %v798
        %v811 = vpack.c.b16 %v801, %v800
        %v812 = vpack.c.b16 %v803, %v802
        %v813 = vpack.c.b16 %v805, %v804
        %v838 = vunpack.c.l.b16 %v758
        %v839 = vunpack.c.l.b16 %v759
        %v840 = vunpack.c.l.b16 %v760
        %v841 = vunpack.c.l.b16 %v761
        %v842 = vunpack.c.l.b16 %v762
        %v843 = vunpack.c.l.b16 %v763
        %v844 = vunpack.c.l.b16 %v764
        %v845 = vunpack.c.l.b16 %v765
        %v846 = vunpack.c.l.b16 %v766
        %v847 = vunpack.c.l.b16 %v767
        %v848 = vunpack.c.l.b16 %v768
        %v849 = vunpack.c.l.b16 %v769
        %v850 = vunpack.c.l.b16 %v770
        %v851 = vunpack.c.l.b16 %v771
        %v852 = vunpack.c.l.b16 %v772
        %v853 = vunpack.c.l.b16 %v773
        %v854 = vpack.c.b16 %v839, %v838
        %v855 = vpack.c.b16 %v841, %v840
        %v856 = vpack.c.b16 %v843, %v842
        %v857 = vpack.c.b16 %v845, %v844
        %v858 = vpack.c.b16 %v847, %v846
        %v859 = vpack.c.b16 %v849, %v848
        %v860 = vpack.c.b16 %v851, %v850
        %v861 = vpack.c.b16 %v853, %v852
        %870 = vmatprep.subr.bf16.mxu0 0
        %871 = vmatpush1.bf16.msra.mxu0 %v854
        %872 = vmatprep.subr.bf16.mxu0 0
        %873 = vmatpush1.bf16.msra.mxu0 %v855
        %874 = vmatprep.subr.bf16.mxu0 0
        %875 = vmatpush1.bf16.msra.mxu0 %v856
        %876 = vmatprep.subr.bf16.mxu0 0
        %877 = vmatpush1.bf16.msra.mxu0 %v857
        %878 = vmatprep.subr.bf16.mxu0 0
        %879 = vmatpush1.bf16.msra.mxu0 %v858
        %880 = vmatprep.subr.bf16.mxu0 0
        %881 = vmatpush1.bf16.msra.mxu0 %v859
        %882 = vmatprep.subr.bf16.mxu0 0
        %883 = vmatpush1.bf16.msra.mxu0 %v860
        %884 = vmatprep.subr.bf16.mxu0 0
        %885 = vmatpush1.bf16.msra.mxu0 %v861
        %886 = vmatprep.subr.bf16.mxu0 0
        %887 = vmatpush1.bf16.msra.mxu0 0
        %888 = vmatprep.subr.bf16.mxu0 0
        %889 = vmatpush1.bf16.msra.mxu0 0
        %890 = vmatprep.subr.bf16.mxu0 0
        %891 = vmatpush1.bf16.msra.mxu0 0
        %892 = vmatprep.subr.bf16.mxu0 0
        %893 = vmatpush1.bf16.msra.mxu0 0
        %894 = vmatprep.subr.bf16.mxu0 0
        %895 = vmatpush1.bf16.msra.mxu0 0
        %896 = vmatprep.subr.bf16.mxu0 0
        %897 = vmatpush1.bf16.msra.mxu0 0
        %898 = vmatprep.subr.bf16.mxu0 0
        %899 = vmatpush1.bf16.msra.mxu0 0
        %900 = vmatprep.subr.bf16.mxu0 0
        %901 = vmatpush1.bf16.msra.mxu0 0
        %902 = vmatprep.mubr.bf16.mxu0 0
        %903 = vmatmul.mubr.bf16.gmra.mrb[0].mxu0 %v806
        %v904 = vpop.f32.mrb[0].mxu0
        %v905 = vadd.f32 0.0, %v904
        %v906 = vpop.f32.mrb[0].mxu0
        %v907 = vpop.f32.mrb[0].mxu0
        %v908 = vadd.f32 0.0, %v907
        %v909 = vpop.f32.mrb[0].mxu0
        %910 = vmatprep.mubr.bf16.mxu0 0
        %911 = vmatmul.mubr.bf16.gmra.mrb[0].mxu0 %v807
        %v912 = vpop.f32.mrb[0].mxu0
        %v913 = vadd.f32 0.0, %v912
        %v914 = vpop.f32.mrb[0].mxu0
        %v915 = vpop.f32.mrb[0].mxu0
        %v916 = vadd.f32 0.0, %v915
        %v917 = vpop.f32.mrb[0].mxu0
        %918 = vmatprep.mubr.bf16.mxu0 0
        %919 = vmatmul.mubr.bf16.gmra.mrb[0].mxu0 %v808
        %v920 = vpop.f32.mrb[0].mxu0
        %v921 = vadd.f32 0.0, %v920
        %v922 = vpop.f32.mrb[0].mxu0
        %v923 = vpop.f32.mrb[0].mxu0
        %v924 = vadd.f32 0.0, %v923
        %v925 = vpop.f32.mrb[0].mxu0
        %926 = vmatprep.mubr.bf16.mxu0 0
        %927 = vmatmul.mubr.bf16.gmra.mrb[0].mxu0 %v809
        %v928 = vpop.f32.mrb[0].mxu0
        %v929 = vadd.f32 0.0, %v928
        %v930 = vpop.f32.mrb[0].mxu0
        %v931 = vpop.f32.mrb[0].mxu0
        %v932 = vadd.f32 0.0, %v931
        %v933 = vpop.f32.mrb[0].mxu0
        %934 = vmatprep.mubr.bf16.mxu0 0
        %935 = vmatmul.mubr.bf16.gmra.mrb[0].mxu0 %v810
        %v936 = vpop.f32.mrb[0].mxu0
        %v937 = vadd.f32 0.0, %v936
        %v938 = vpop.f32.mrb[0].mxu0
        %v939 = vpop.f32.mrb[0].mxu0
        %v940 = vadd.f32 0.0, %v939
        %v941 = vpop.f32.mrb[0].mxu0
        %942 = vmatprep.mubr.bf16.mxu0 0
        %943 = vmatmul.mubr.bf16.gmra.mrb[0].mxu0 %v811
        %v944 = vpop.f32.mrb[0].mxu0
        %v945 = vadd.f32 0.0, %v944
        %v946 = vpop.f32.mrb[0].mxu0
        %v947 = vpop.f32.mrb[0].mxu0
        %v948 = vadd.f32 0.0, %v947
        %v949 = vpop.f32.mrb[0].mxu0
        %950 = vmatprep.mubr.bf16.mxu0 0
        %951 = vmatmul.mubr.bf16.gmra.mrb[0].mxu0 %v812
        %v952 = vpop.f32.mrb[0].mxu0
        %v953 = vadd.f32 0.0, %v952
        %v954 = vpop.f32.mrb[0].mxu0
        %v955 = vpop.f32.mrb[0].mxu0
        %v956 = vadd.f32 0.0, %v955
        %v957 = vpop.f32.mrb[0].mxu0
        %958 = vmatprep.mubr.bf16.mxu0 0
        %959 = vmatmul.mubr.bf16.gmra.mrb[0].mxu0 %v813
        %v960 = vpop.f32.mrb[0].mxu0
        %v961 = vadd.f32 0.0, %v960
        %v962 = vpop.f32.mrb[0].mxu0
        %v963 = vpop.f32.mrb[0].mxu0
        %v964 = vadd.f32 0.0, %v963
        %v965 = vpop.f32.mrb[0].mxu0
        %966 = vdwg.mxu0
        %v967 = vadd.f32 %v726, %v905
        %v968 = vadd.f32 %v727, %v908
        %v969 = vadd.f32 %v728, %v913
        %v970 = vadd.f32 %v729, %v916
        %v971 = vadd.f32 %v730, %v921
        %v972 = vadd.f32 %v731, %v924
        %v973 = vadd.f32 %v732, %v929
        %v974 = vadd.f32 %v733, %v932
        %v975 = vadd.f32 %v734, %v937
        %v976 = vadd.f32 %v735, %v940
        %v977 = vadd.f32 %v736, %v945
        %v978 = vadd.f32 %v737, %v948
        %v979 = vadd.f32 %v738, %v953
        %v980 = vadd.f32 %v739, %v956
        %v981 = vadd.f32 %v740, %v961
        %v982 = vadd.f32 %v741, %v964
        %983 = vst [vmem:[#allocation2] sm:$0xff] %v967
        %984 = vst [vmem:[#allocation2 + $0x8] sm:$0xff] %v968
        %985 = vst [vmem:[#allocation2 + $0x10] sm:$0xff] %v969
        %986 = vst [vmem:[#allocation2 + $0x18] sm:$0xff] %v970
        %987 = vst [vmem:[#allocation2 + $0x20] sm:$0xff] %v971
        %988 = vst [vmem:[#allocation2 + $0x28] sm:$0xff] %v972
        %989 = vst [vmem:[#allocation2 + $0x30] sm:$0xff] %v973
        %990 = vst [vmem:[#allocation2 + $0x38] sm:$0xff] %v974
        %991 = vst [vmem:[#allocation2 + $0x40] sm:$0xff] %v975
        %992 = vst [vmem:[#allocation2 + $0x48] sm:$0xff] %v976
        %993 = vst [vmem:[#allocation2 + $0x50] sm:$0xff] %v977
        %994 = vst [vmem:[#allocation2 + $0x58] sm:$0xff] %v978
        %995 = vst [vmem:[#allocation2 + $0x60] sm:$0xff] %v979
        %996 = vst [vmem:[#allocation2 + $0x68] sm:$0xff] %v980
        %997 = vst [vmem:[#allocation2 + $0x70] sm:$0xff] %v981
        %998 = vst [vmem:[#allocation2 + $0x78] sm:$0xff] %v982
        %p999 = scmp.eq.s32.totalorder %s44, 1
        // Predicated region
        $region121: #{tpu_custom_call.1} parent=83 // pred_check
          %p1000 = pneg %p999
        $region122: #{tpu_custom_call.1} parent=83 // pred_check_branch
          %1002 = sbr.rel (%p1000) target = $region124
        $region123: #{tpu_custom_call.1} parent=83 // pred_region
          %v1003 = vld [vmem:[#allocation2] sm:$0xff]
          %v1004 = vld [vmem:[#allocation2 + $0x8] sm:$0xff]
          %v1005 = vld [vmem:[#allocation2 + $0x10] sm:$0xff]
          %v1006 = vld [vmem:[#allocation2 + $0x18] sm:$0xff]
          %v1007 = vld [vmem:[#allocation2 + $0x20] sm:$0xff]
          %v1008 = vld [vmem:[#allocation2 + $0x28] sm:$0xff]
          %v1009 = vld [vmem:[#allocation2 + $0x30] sm:$0xff]
          %v1010 = vld [vmem:[#allocation2 + $0x38] sm:$0xff]
          %v1011 = vld [vmem:[#allocation2 + $0x40] sm:$0xff]
          %v1012 = vld [vmem:[#allocation2 + $0x48] sm:$0xff]
          %v1013 = vld [vmem:[#allocation2 + $0x50] sm:$0xff]
          %v1014 = vld [vmem:[#allocation2 + $0x58] sm:$0xff]
          %v1015 = vld [vmem:[#allocation2 + $0x60] sm:$0xff]
          %v1016 = vld [vmem:[#allocation2 + $0x68] sm:$0xff]
          %v1017 = vld [vmem:[#allocation2 + $0x70] sm:$0xff]
          %v1018 = vld [vmem:[#allocation2 + $0x78] sm:$0xff]
          %v1019 = vld [vmem:[#allocation9] sm:$0xff]
          %v1020 = vld [vmem:[#allocation9 + $0x8] sm:$0xff]
          %v1021 = vld [vmem:[#allocation9 + $0x10] sm:$0xff]
          %v1022 = vld [vmem:[#allocation9 + $0x18] sm:$0xff]
          %v1023 = vld [vmem:[#allocation9 + $0x20] sm:$0xff]
          %v1024 = vld [vmem:[#allocation9 + $0x28] sm:$0xff]
          %v1025 = vld [vmem:[#allocation9 + $0x30] sm:$0xff]
          %v1026 = vld [vmem:[#allocation9 + $0x38] sm:$0xff]
          %v1027 = vld [vmem:[#allocation9 + $0x40] sm:$0xff]
          %v1028 = vld [vmem:[#allocation9 + $0x48] sm:$0xff]
          %v1029 = vld [vmem:[#allocation9 + $0x50] sm:$0xff]
          %v1030 = vld [vmem:[#allocation9 + $0x58] sm:$0xff]
          %v1031 = vld [vmem:[#allocation9 + $0x60] sm:$0xff]
          %v1032 = vld [vmem:[#allocation9 + $0x68] sm:$0xff]
          %v1033 = vld [vmem:[#allocation9 + $0x70] sm:$0xff]
          %v1034 = vld [vmem:[#allocation9 + $0x78] sm:$0xff]
          %v1035 = vld [vmem:[#allocation10] sm:$0x1]
          %v1037 = vlaneseq
          %v1038 = vshrl.u32 %v1037, 7
          %v1039 = vsub.s32 0, %v1038
          %v1040 = vrot.slane %v1035, %v1039
          %1042 = vmatprep.subr.mxu0 0.0
          %1043 = vmatpush1.msra.mxu0 %v1019
          %1044 = vmatprep.subr.mxu0 0.0
          %1045 = vmatpush1.msra.mxu0 %v1020
          %1046 = vmatprep.subr.mxu0 0.0
          %1047 = vmatpush1.msra.mxu0 %v1021
          %1048 = vmatprep.subr.mxu0 0.0
          %1049 = vmatpush1.msra.mxu0 %v1022
          %1050 = vmatprep.subr.mxu0 0.0
          %1051 = vmatpush1.msra.mxu0 %v1023
          %1052 = vmatprep.subr.mxu0 0.0
          %1053 = vmatpush1.msra.mxu0 %v1024
          %1054 = vmatprep.subr.mxu0 0.0
          %1055 = vmatpush1.msra.mxu0 %v1025
          %1056 = vmatprep.subr.mxu0 0.0
          %1057 = vmatpush1.msra.mxu0 %v1026
          %1058 = vmatprep.subr.mxu0 0.0
          %1059 = vmatpush1.msra.mxu0 %v1027
          %1060 = vmatprep.subr.mxu0 0.0
          %1061 = vmatpush1.msra.mxu0 %v1028
          %1062 = vmatprep.subr.mxu0 0.0
          %1063 = vmatpush1.msra.mxu0 %v1029
          %1064 = vmatprep.subr.mxu0 0.0
          %1065 = vmatpush1.msra.mxu0 %v1030
          %1066 = vmatprep.subr.mxu0 0.0
          %1067 = vmatpush1.msra.mxu0 %v1031
          %1068 = vmatprep.subr.mxu0 0.0
          %1069 = vmatpush1.msra.mxu0 %v1032
          %1070 = vmatprep.subr.mxu0 0.0
          %1071 = vmatpush1.msra.mxu0 %v1033
          %1072 = vmatprep.subr.mxu0 0.0
          %1073 = vmatpush1.msra.mxu0 %v1034
          %1074 = vmatprep.subr.mxu0 0.0
          %1075 = vmatpush1.msra.mxu0 0.0
          %1076 = vmatprep.subr.mxu0 0.0
          %1077 = vmatpush1.msra.mxu0 0.0
          %1078 = vmatprep.subr.mxu0 0.0
          %1079 = vmatpush1.msra.mxu0 0.0
          %1080 = vmatprep.subr.mxu0 0.0
          %1081 = vmatpush1.msra.mxu0 0.0
          %1082 = vmatprep.subr.mxu0 0.0
          %1083 = vmatpush1.msra.mxu0 0.0
          %1084 = vmatprep.subr.mxu0 0.0
          %1085 = vmatpush1.msra.mxu0 0.0
          %1086 = vmatprep.subr.mxu0 0.0
          %1087 = vmatpush1.msra.mxu0 0.0
          %1088 = vmatprep.subr.mxu0 0.0
          %1089 = vmatpush1.msra.mxu0 0.0
          %1090 = vmatprep.subr.mxu0 0.0
          %1091 = vmatpush1.msra.mxu0 0.0
          %1092 = vmatprep.subr.mxu0 0.0
          %1093 = vmatpush1.msra.mxu0 0.0
          %1094 = vmatprep.subr.mxu0 0.0
          %1095 = vmatpush1.msra.mxu0 0.0
          %1096 = vmatprep.subr.mxu0 0.0
          %1097 = vmatpush1.msra.mxu0 0.0
          %1098 = vmatprep.subr.mxu0 0.0
          %1099 = vmatpush1.msra.mxu0 0.0
          %1100 = vmatprep.subr.mxu0 0.0
          %1101 = vmatpush1.msra.mxu0 0.0
          %1102 = vmatprep.subr.mxu0 0.0
          %1103 = vmatpush1.msra.mxu0 0.0
          %1104 = vmatprep.subr.mxu0 0.0
          %1105 = vmatpush1.msra.mxu0 0.0
          %1106 = vmatprep.mubr.f32.mxu0 0.0
          %1107 = vmatmul.mubr.f32.gmra.mrb[0].mxu0 %v1003
          %v1108 = vpop.f32.mrb[0].mxu0
          %v1109 = vadd.f32 %v1040, %v1108
          %v1110 = vpop.f32.mrb[0].mxu0
          %1111 = vmatprep.mubr.f32.mxu0 0.0
          %1112 = vmatmul.mubr.f32.gmra.mrb[0].mxu0 %v1004
          %v1113 = vpop.f32.mrb[0].mxu0
          %v1114 = vadd.f32 %v1040, %v1113
          %v1115 = vpop.f32.mrb[0].mxu0
          %1116 = vmatprep.mubr.f32.mxu0 0.0
          %1117 = vmatmul.mubr.f32.gmra.mrb[0].mxu0 %v1005
          %v1118 = vpop.f32.mrb[0].mxu0
          %v1119 = vadd.f32 %v1040, %v1118
          %v1120 = vpop.f32.mrb[0].mxu0
          %1121 = vmatprep.mubr.f32.mxu0 0.0
          %1122 = vmatmul.mubr.f32.gmra.mrb[0].mxu0 %v1006
          %v1123 = vpop.f32.mrb[0].mxu0
          %v1124 = vadd.f32 %v1040, %v1123
          %v1125 = vpop.f32.mrb[0].mxu0
          %1126 = vmatprep.mubr.f32.mxu0 0.0
          %1127 = vmatmul.mubr.f32.gmra.mrb[0].mxu0 %v1007
          %v1128 = vpop.f32.mrb[0].mxu0
          %v1129 = vadd.f32 %v1040, %v1128
          %v1130 = vpop.f32.mrb[0].mxu0
          %1131 = vmatprep.mubr.f32.mxu0 0.0
          %1132 = vmatmul.mubr.f32.gmra.mrb[0].mxu0 %v1008
          %v1133 = vpop.f32.mrb[0].mxu0
          %v1134 = vadd.f32 %v1040, %v1133
          %v1135 = vpop.f32.mrb[0].mxu0
          %1136 = vmatprep.mubr.f32.mxu0 0.0
          %1137 = vmatmul.mubr.f32.gmra.mrb[0].mxu0 %v1009
          %v1138 = vpop.f32.mrb[0].mxu0
          %v1139 = vadd.f32 %v1040, %v1138
          %v1140 = vpop.f32.mrb[0].mxu0
          %1141 = vmatprep.mubr.f32.mxu0 0.0
          %1142 = vmatmul.mubr.f32.gmra.mrb[0].mxu0 %v1010
          %v1143 = vpop.f32.mrb[0].mxu0
          %v1144 = vadd.f32 %v1040, %v1143
          %v1145 = vpop.f32.mrb[0].mxu0
          %1146 = vmatprep.mubr.f32.mxu0 0.0
          %1147 = vmatmul.mubr.f32.gmra.mrb[0].mxu0 %v1011
          %v1148 = vpop.f32.mrb[0].mxu0
          %v1149 = vadd.f32 %v1040, %v1148
          %v1150 = vpop.f32.mrb[0].mxu0
          %1151 = vmatprep.mubr.f32.mxu0 0.0
          %1152 = vmatmul.mubr.f32.gmra.mrb[0].mxu0 %v1012
          %v1153 = vpop.f32.mrb[0].mxu0
          %v1154 = vadd.f32 %v1040, %v1153
          %v1155 = vpop.f32.mrb[0].mxu0
          %1156 = vmatprep.mubr.f32.mxu0 0.0
          %1157 = vmatmul.mubr.f32.gmra.mrb[0].mxu0 %v1013
          %v1158 = vpop.f32.mrb[0].mxu0
          %v1159 = vadd.f32 %v1040, %v1158
          %v1160 = vpop.f32.mrb[0].mxu0
          %1161 = vmatprep.mubr.f32.mxu0 0.0
          %1162 = vmatmul.mubr.f32.gmra.mrb[0].mxu0 %v1014
          %v1163 = vpop.f32.mrb[0].mxu0
          %v1164 = vadd.f32 %v1040, %v1163
          %v1165 = vpop.f32.mrb[0].mxu0
          %1166 = vmatprep.mubr.f32.mxu0 0.0
          %1167 = vmatmul.mubr.f32.gmra.mrb[0].mxu0 %v1015
          %v1168 = vpop.f32.mrb[0].mxu0
          %v1169 = vadd.f32 %v1040, %v1168
          %v1170 = vpop.f32.mrb[0].mxu0
          %1171 = vmatprep.mubr.f32.mxu0 0.0
          %1172 = vmatmul.mubr.f32.gmra.mrb[0].mxu0 %v1016
          %v1173 = vpop.f32.mrb[0].mxu0
          %v1174 = vadd.f32 %v1040, %v1173
          %v1175 = vpop.f32.mrb[0].mxu0
          %1176 = vmatprep.mubr.f32.mxu0 0.0
          %1177 = vmatmul.mubr.f32.gmra.mrb[0].mxu0 %v1017
          %v1178 = vpop.f32.mrb[0].mxu0
          %v1179 = vadd.f32 %v1040, %v1178
          %v1180 = vpop.f32.mrb[0].mxu0
          %1181 = vmatprep.mubr.f32.mxu0 0.0
          %1182 = vmatmul.mubr.f32.gmra.mrb[0].mxu0 %v1018
          %v1183 = vpop.f32.mrb[0].mxu0
          %v1184 = vadd.f32 %v1040, %v1183
          %v1185 = vpop.f32.mrb[0].mxu0
          %1186 = vdwg.mxu0
          %v1187 = vmax.f32 %v1109, 0.0
          %v1188 = vmax.f32 %v1114, 0.0
          %v1189 = vmax.f32 %v1119, 0.0
          %v1190 = vmax.f32 %v1124, 0.0
          %v1191 = vmax.f32 %v1129, 0.0
          %v1192 = vmax.f32 %v1134, 0.0
          %v1193 = vmax.f32 %v1139, 0.0
          %v1194 = vmax.f32 %v1144, 0.0
          %v1195 = vmax.f32 %v1149, 0.0
          %v1196 = vmax.f32 %v1154, 0.0
          %v1197 = vmax.f32 %v1159, 0.0
          %v1198 = vmax.f32 %v1164, 0.0
          %v1199 = vmax.f32 %v1169, 0.0
          %v1200 = vmax.f32 %v1174, 0.0
          %v1201 = vmax.f32 %v1179, 0.0
          %v1202 = vmax.f32 %v1184, 0.0
          %v1203 = vld [vmem:[#allocation12] sm:$0xff]
          %v1204 = vld [vmem:[#allocation12 + $0x8] sm:$0xff]
          %v1205 = vld [vmem:[#allocation12 + $0x10] sm:$0xff]
          %v1206 = vld [vmem:[#allocation12 + $0x18] sm:$0xff]
          %v1207 = vld [vmem:[#allocation12 + $0x20] sm:$0xff]
          %v1208 = vld [vmem:[#allocation12 + $0x28] sm:$0xff]
          %v1209 = vld [vmem:[#allocation12 + $0x30] sm:$0xff]
          %v1210 = vld [vmem:[#allocation12 + $0x38] sm:$0xff]
          %v1211 = vld [vmem:[#allocation12 + $0x40] sm:$0xff]
          %v1212 = vld [vmem:[#allocation12 + $0x48] sm:$0xff]
          %v1213 = vld [vmem:[#allocation12 + $0x50] sm:$0xff]
          %v1214 = vld [vmem:[#allocation12 + $0x58] sm:$0xff]
          %v1215 = vld [vmem:[#allocation12 + $0x60] sm:$0xff]
          %v1216 = vld [vmem:[#allocation12 + $0x68] sm:$0xff]
          %v1217 = vld [vmem:[#allocation12 + $0x70] sm:$0xff]
          %v1218 = vld [vmem:[#allocation12 + $0x78] sm:$0xff]
          %v1219 = vld [vmem:[#allocation12 + $0x80] sm:$0xff]
          %v1220 = vld [vmem:[#allocation12 + $0x88] sm:$0xff]
          %v1221 = vld [vmem:[#allocation12 + $0x90] sm:$0xff]
          %v1222 = vld [vmem:[#allocation12 + $0x98] sm:$0xff]
          %v1223 = vld [vmem:[#allocation12 + $0xa0] sm:$0xff]
          %v1224 = vld [vmem:[#allocation12 + $0xa8] sm:$0xff]
          %v1225 = vld [vmem:[#allocation12 + $0xb0] sm:$0xff]
          %v1226 = vld [vmem:[#allocation12 + $0xb8] sm:$0xff]
          %v1227 = vld [vmem:[#allocation12 + $0xc0] sm:$0xff]
          %v1228 = vld [vmem:[#allocation12 + $0xc8] sm:$0xff]
          %v1229 = vld [vmem:[#allocation12 + $0xd0] sm:$0xff]
          %v1230 = vld [vmem:[#allocation12 + $0xd8] sm:$0xff]
          %v1231 = vld [vmem:[#allocation12 + $0xe0] sm:$0xff]
          %v1232 = vld [vmem:[#allocation12 + $0xe8] sm:$0xff]
          %v1233 = vld [vmem:[#allocation12 + $0xf0] sm:$0xff]
          %v1234 = vld [vmem:[#allocation12 + $0xf8] sm:$0xff]
          %v1235 = vld [vmem:[#allocation12 + $0x100] sm:$0xff]
          %v1236 = vld [vmem:[#allocation12 + $0x108] sm:$0xff]
          %v1237 = vld [vmem:[#allocation12 + $0x110] sm:$0xff]
          %v1238 = vld [vmem:[#allocation12 + $0x118] sm:$0xff]
          %v1239 = vld [vmem:[#allocation12 + $0x120] sm:$0xff]
          %v1240 = vld [vmem:[#allocation12 + $0x128] sm:$0xff]
          %v1241 = vld [vmem:[#allocation12 + $0x130] sm:$0xff]
          %v1242 = vld [vmem:[#allocation12 + $0x138] sm:$0xff]
          %v1243 = vld [vmem:[#allocation12 + $0x140] sm:$0xff]
          %v1244 = vld [vmem:[#allocation12 + $0x148] sm:$0xff]
          %v1245 = vld [vmem:[#allocation12 + $0x150] sm:$0xff]
          %v1246 = vld [vmem:[#allocation12 + $0x158] sm:$0xff]
          %v1247 = vld [vmem:[#allocation12 + $0x160] sm:$0xff]
          %v1248 = vld [vmem:[#allocation12 + $0x168] sm:$0xff]
          %v1249 = vld [vmem:[#allocation12 + $0x170] sm:$0xff]
          %v1250 = vld [vmem:[#allocation12 + $0x178] sm:$0xff]
          %v1251 = vld [vmem:[#allocation12 + $0x180] sm:$0xff]
          %v1252 = vld [vmem:[#allocation12 + $0x188] sm:$0xff]
          %v1253 = vld [vmem:[#allocation12 + $0x190] sm:$0xff]
          %v1254 = vld [vmem:[#allocation12 + $0x198] sm:$0xff]
          %v1255 = vld [vmem:[#allocation12 + $0x1a0] sm:$0xff]
          %v1256 = vld [vmem:[#allocation12 + $0x1a8] sm:$0xff]
          %v1257 = vld [vmem:[#allocation12 + $0x1b0] sm:$0xff]
          %v1258 = vld [vmem:[#allocation12 + $0x1b8] sm:$0xff]
          %v1259 = vld [vmem:[#allocation12 + $0x1c0] sm:$0xff]
          %v1260 = vld [vmem:[#allocation12 + $0x1c8] sm:$0xff]
          %v1261 = vld [vmem:[#allocation12 + $0x1d0] sm:$0xff]
          %v1262 = vld [vmem:[#allocation12 + $0x1d8] sm:$0xff]
          %v1263 = vld [vmem:[#allocation12 + $0x1e0] sm:$0xff]
          %v1264 = vld [vmem:[#allocation12 + $0x1e8] sm:$0xff]
          %v1265 = vld [vmem:[#allocation12 + $0x1f0] sm:$0xff]
          %v1266 = vld [vmem:[#allocation12 + $0x1f8] sm:$0xff]
          %v1267 = vld [vmem:[%s6] sm:$0xf]
          %v1269 = vlaneseq
          %v1270 = vshrl.u32 %v1269, 7
          %v1271 = vsub.s32 0, %v1270
          %v1272 = vrot.slane %v1267, %v1271
          %v1273 = vlaneseq
          %v1274 = vshrl.u32 %v1273, 7
          %v1275 = vsub.s32 1, %v1274
          %v1276 = vrot.slane %v1267, %v1275
          %v1277 = vlaneseq
          %v1278 = vshrl.u32 %v1277, 7
          %v1279 = vsub.s32 2, %v1278
          %v1280 = vrot.slane %v1267, %v1279
          %v1281 = vlaneseq
          %v1282 = vshrl.u32 %v1281, 7
          %v1283 = vsub.s32 3, %v1282
          %v1284 = vrot.slane %v1267, %v1283
          %1289 = vmatprep.subr.mxu0 %v1204
          %1290 = vmatpush1.msra.mxu0 %v1203
          %1291 = vmatprep.subr.mxu0 %v1208
          %1292 = vmatpush1.msra.mxu0 %v1207
          %1293 = vmatprep.subr.mxu0 %v1212
          %1294 = vmatpush1.msra.mxu0 %v1211
          %1295 = vmatprep.subr.mxu0 %v1216
          %1296 = vmatpush1.msra.mxu0 %v1215
          %1297 = vmatprep.subr.mxu0 %v1220
          %1298 = vmatpush1.msra.mxu0 %v1219
          %1299 = vmatprep.subr.mxu0 %v1224
          %1300 = vmatpush1.msra.mxu0 %v1223
          %1301 = vmatprep.subr.mxu0 %v1228
          %1302 = vmatpush1.msra.mxu0 %v1227
          %1303 = vmatprep.subr.mxu0 %v1232
          %1304 = vmatpush1.msra.mxu0 %v1231
          %1305 = vmatprep.subr.mxu0 %v1236
          %1306 = vmatpush1.msra.mxu0 %v1235
          %1307 = vmatprep.subr.mxu0 %v1240
          %1308 = vmatpush1.msra.mxu0 %v1239
          %1309 = vmatprep.subr.mxu0 %v1244
          %1310 = vmatpush1.msra.mxu0 %v1243
          %1311 = vmatprep.subr.mxu0 %v1248
          %1312 = vmatpush1.msra.mxu0 %v1247
          %1313 = vmatprep.subr.mxu0 %v1252
          %1314 = vmatpush1.msra.mxu0 %v1251
          %1315 = vmatprep.subr.mxu0 %v1256
          %1316 = vmatpush1.msra.mxu0 %v1255
          %1317 = vmatprep.subr.mxu0 %v1260
          %1318 = vmatpush1.msra.mxu0 %v1259
          %1319 = vmatprep.subr.mxu0 %v1264
          %1320 = vmatpush1.msra.mxu0 %v1263
          %1321 = vmatprep.subr.mxu0 0.0
          %1322 = vmatpush1.msra.mxu0 0.0
          %1323 = vmatprep.subr.mxu0 0.0
          %1324 = vmatpush1.msra.mxu0 0.0
          %1325 = vmatprep.subr.mxu0 0.0
          %1326 = vmatpush1.msra.mxu0 0.0
          %1327 = vmatprep.subr.mxu0 0.0
          %1328 = vmatpush1.msra.mxu0 0.0
          %1329 = vmatprep.subr.mxu0 0.0
          %1330 = vmatpush1.msra.mxu0 0.0
          %1331 = vmatprep.subr.mxu0 0.0
          %1332 = vmatpush1.msra.mxu0 0.0
          %1333 = vmatprep.subr.mxu0 0.0
          %1334 = vmatpush1.msra.mxu0 0.0
          %1335 = vmatprep.subr.mxu0 0.0
          %1336 = vmatpush1.msra.mxu0 0.0
          %1337 = vmatprep.subr.mxu0 0.0
          %1338 = vmatpush1.msra.mxu0 0.0
          %1339 = vmatprep.subr.mxu0 0.0
          %1340 = vmatpush1.msra.mxu0 0.0
          %1341 = vmatprep.subr.mxu0 0.0
          %1342 = vmatpush1.msra.mxu0 0.0
          %1343 = vmatprep.subr.mxu0 0.0
          %1344 = vmatpush1.msra.mxu0 0.0
          %1345 = vmatprep.subr.mxu0 0.0
          %1346 = vmatpush1.msra.mxu0 0.0
          %1347 = vmatprep.subr.mxu0 0.0
          %1348 = vmatpush1.msra.mxu0 0.0
          %1349 = vmatprep.subr.mxu0 0.0
          %1350 = vmatpush1.msra.mxu0 0.0
          %1351 = vmatprep.subr.mxu0 0.0
          %1352 = vmatpush1.msra.mxu0 0.0
          %1353 = vmatprep.mubr.f32.mxu0 0.0
          %1354 = vmatmul.mubr.f32.gmra.mrb[0].mxu0 %v1187
          %v1355 = vpop.f32.mrb[0].mxu0
          %v1356 = vadd.f32 %v1272, %v1355
          %v1357 = vpop.f32.mrb[0].mxu0
          %v1358 = vadd.f32 %v1276, %v1357
          %1359 = vmatprep.mubr.f32.mxu0 0.0
          %1360 = vmatmul.mubr.f32.gmra.mrb[0].mxu0 %v1188
          %v1361 = vpop.f32.mrb[0].mxu0
          %v1362 = vadd.f32 %v1272, %v1361
          %v1363 = vpop.f32.mrb[0].mxu0
          %v1364 = vadd.f32 %v1276, %v1363
          %1365 = vmatprep.mubr.f32.mxu0 0.0
          %1366 = vmatmul.mubr.f32.gmra.mrb[0].mxu0 %v1189
          %v1367 = vpop.f32.mrb[0].mxu0
          %v1368 = vadd.f32 %v1272, %v1367
          %v1369 = vpop.f32.mrb[0].mxu0
          %v1370 = vadd.f32 %v1276, %v1369
          %1371 = vmatprep.mubr.f32.mxu0 0.0
          %1372 = vmatmul.mubr.f32.gmra.mrb[0].mxu0 %v1190
          %v1373 = vpop.f32.mrb[0].mxu0
          %v1374 = vadd.f32 %v1272, %v1373
          %v1375 = vpop.f32.mrb[0].mxu0
          %v1376 = vadd.f32 %v1276, %v1375
          %1377 = vmatprep.mubr.f32.mxu0 0.0
          %1378 = vmatmul.mubr.f32.gmra.mrb[0].mxu0 %v1191
          %v1379 = vpop.f32.mrb[0].mxu0
          %v1380 = vadd.f32 %v1272, %v1379
          %v1381 = vpop.f32.mrb[0].mxu0
          %v1382 = vadd.f32 %v1276, %v1381
          %1383 = vmatprep.mubr.f32.mxu0 0.0
          %1384 = vmatmul.mubr.f32.gmra.mrb[0].mxu0 %v1192
          %v1385 = vpop.f32.mrb[0].mxu0
          %v1386 = vadd.f32 %v1272, %v1385
          %v1387 = vpop.f32.mrb[0].mxu0
          %v1388 = vadd.f32 %v1276, %v1387
          %1389 = vmatprep.mubr.f32.mxu0 0.0
          %1390 = vmatmul.mubr.f32.gmra.mrb[0].mxu0 %v1193
          %v1391 = vpop.f32.mrb[0].mxu0
          %v1392 = vadd.f32 %v1272, %v1391
          %v1393 = vpop.f32.mrb[0].mxu0
          %v1394 = vadd.f32 %v1276, %v1393
          %1395 = vmatprep.mubr.f32.mxu0 0.0
          %1396 = vmatmul.mubr.f32.gmra.mrb[0].mxu0 %v1194
          %v1397 = vpop.f32.mrb[0].mxu0
          %v1398 = vadd.f32 %v1272, %v1397
          %v1399 = vpop.f32.mrb[0].mxu0
          %v1400 = vadd.f32 %v1276, %v1399
          %1401 = vmatprep.mubr.f32.mxu0 0.0
          %1402 = vmatmul.mubr.f32.gmra.mrb[0].mxu0 %v1195
          %v1403 = vpop.f32.mrb[0].mxu0
          %v1404 = vadd.f32 %v1272, %v1403
          %v1405 = vpop.f32.mrb[0].mxu0
          %v1406 = vadd.f32 %v1276, %v1405
          %1407 = vmatprep.mubr.f32.mxu0 0.0
          %1408 = vmatmul.mubr.f32.gmra.mrb[0].mxu0 %v1196
          %v1409 = vpop.f32.mrb[0].mxu0
          %v1410 = vadd.f32 %v1272, %v1409
          %v1411 = vpop.f32.mrb[0].mxu0
          %v1412 = vadd.f32 %v1276, %v1411
          %1413 = vmatprep.mubr.f32.mxu0 0.0
          %1414 = vmatmul.mubr.f32.gmra.mrb[0].mxu0 %v1197
          %v1415 = vpop.f32.mrb[0].mxu0
          %v1416 = vadd.f32 %v1272, %v1415
          %v1417 = vpop.f32.mrb[0].mxu0
          %v1418 = vadd.f32 %v1276, %v1417
          %1419 = vmatprep.mubr.f32.mxu0 0.0
          %1420 = vmatmul.mubr.f32.gmra.mrb[0].mxu0 %v1198
          %v1421 = vpop.f32.mrb[0].mxu0
          %v1422 = vadd.f32 %v1272, %v1421
          %v1423 = vpop.f32.mrb[0].mxu0
          %v1424 = vadd.f32 %v1276, %v1423
          %1425 = vmatprep.mubr.f32.mxu0 0.0
          %1426 = vmatmul.mubr.f32.gmra.mrb[0].mxu0 %v1199
          %v1427 = vpop.f32.mrb[0].mxu0
          %v1428 = vadd.f32 %v1272, %v1427
          %v1429 = vpop.f32.mrb[0].mxu0
          %v1430 = vadd.f32 %v1276, %v1429
          %1431 = vmatprep.mubr.f32.mxu0 0.0
          %1432 = vmatmul.mubr.f32.gmra.mrb[0].mxu0 %v1200
          %v1433 = vpop.f32.mrb[0].mxu0
          %v1434 = vadd.f32 %v1272, %v1433
          %v1435 = vpop.f32.mrb[0].mxu0
          %v1436 = vadd.f32 %v1276, %v1435
          %1437 = vmatprep.mubr.f32.mxu0 0.0
          %1438 = vmatmul.mubr.f32.gmra.mrb[0].mxu0 %v1201
          %v1439 = vpop.f32.mrb[0].mxu0
          %v1440 = vadd.f32 %v1272, %v1439
          %v1441 = vpop.f32.mrb[0].mxu0
          %v1442 = vadd.f32 %v1276, %v1441
          %1443 = vmatprep.mubr.f32.mxu0 0.0
          %1444 = vmatmul.mubr.f32.gmra.mrb[0].mxu0 %v1202
          %v1445 = vpop.f32.mrb[0].mxu0
          %v1446 = vadd.f32 %v1272, %v1445
          %v1447 = vpop.f32.mrb[0].mxu0
          %v1448 = vadd.f32 %v1276, %v1447
          %1449 = vdwg.mxu0
          %1450 = vmatprep.subr.mxu0 %v1206
          %1451 = vmatpush1.msra.mxu0 %v1205
          %1452 = vmatprep.subr.mxu0 %v1210
          %1453 = vmatpush1.msra.mxu0 %v1209
          %1454 = vmatprep.subr.mxu0 %v1214
          %1455 = vmatpush1.msra.mxu0 %v1213
          %1456 = vmatprep.subr.mxu0 %v1218
          %1457 = vmatpush1.msra.mxu0 %v1217
          %1458 = vmatprep.subr.mxu0 %v1222
          %1459 = vmatpush1.msra.mxu0 %v1221
          %1460 = vmatprep.subr.mxu0 %v1226
          %1461 = vmatpush1.msra.mxu0 %v1225
          %1462 = vmatprep.subr.mxu0 %v1230
          %1463 = vmatpush1.msra.mxu0 %v1229
          %1464 = vmatprep.subr.mxu0 %v1234
          %1465 = vmatpush1.msra.mxu0 %v1233
          %1466 = vmatprep.subr.mxu0 %v1238
          %1467 = vmatpush1.msra.mxu0 %v1237
          %1468 = vmatprep.subr.mxu0 %v1242
          %1469 = vmatpush1.msra.mxu0 %v1241
          %1470 = vmatprep.subr.mxu0 %v1246
          %1471 = vmatpush1.msra.mxu0 %v1245
          %1472 = vmatprep.subr.mxu0 %v1250
          %1473 = vmatpush1.msra.mxu0 %v1249
          %1474 = vmatprep.subr.mxu0 %v1254
          %1475 = vmatpush1.msra.mxu0 %v1253
          %1476 = vmatprep.subr.mxu0 %v1258
          %1477 = vmatpush1.msra.mxu0 %v1257
          %1478 = vmatprep.subr.mxu0 %v1262
          %1479 = vmatpush1.msra.mxu0 %v1261
          %1480 = vmatprep.subr.mxu0 %v1266
          %1481 = vmatpush1.msra.mxu0 %v1265
          %1482 = vmatprep.subr.mxu0 0.0
          %1483 = vmatpush1.msra.mxu0 0.0
          %1484 = vmatprep.subr.mxu0 0.0
          %1485 = vmatpush1.msra.mxu0 0.0
          %1486 = vmatprep.subr.mxu0 0.0
          %1487 = vmatpush1.msra.mxu0 0.0
          %1488 = vmatprep.subr.mxu0 0.0
          %1489 = vmatpush1.msra.mxu0 0.0
          %1490 = vmatprep.subr.mxu0 0.0
          %1491 = vmatpush1.msra.mxu0 0.0
          %1492 = vmatprep.subr.mxu0 0.0
          %1493 = vmatpush1.msra.mxu0 0.0
          %1494 = vmatprep.subr.mxu0 0.0
          %1495 = vmatpush1.msra.mxu0 0.0
          %1496 = vmatprep.subr.mxu0 0.0
          %1497 = vmatpush1.msra.mxu0 0.0
          %1498 = vmatprep.subr.mxu0 0.0
          %1499 = vmatpush1.msra.mxu0 0.0
          %1500 = vmatprep.subr.mxu0 0.0
          %1501 = vmatpush1.msra.mxu0 0.0
          %1502 = vmatprep.subr.mxu0 0.0
          %1503 = vmatpush1.msra.mxu0 0.0
          %1504 = vmatprep.subr.mxu0 0.0
          %1505 = vmatpush1.msra.mxu0 0.0
          %1506 = vmatprep.subr.mxu0 0.0
          %1507 = vmatpush1.msra.mxu0 0.0
          %1508 = vmatprep.subr.mxu0 0.0
          %1509 = vmatpush1.msra.mxu0 0.0
          %1510 = vmatprep.subr.mxu0 0.0
          %1511 = vmatpush1.msra.mxu0 0.0
          %1512 = vmatprep.subr.mxu0 0.0
          %1513 = vmatpush1.msra.mxu0 0.0
          %1514 = vmatprep.mubr.f32.mxu0 0.0
          %1515 = vmatmul.mubr.f32.gmra.mrb[0].mxu0 %v1187
          %v1516 = vpop.f32.mrb[0].mxu0
          %v1517 = vadd.f32 %v1280, %v1516
          %v1518 = vpop.f32.mrb[0].mxu0
          %v1519 = vadd.f32 %v1284, %v1518
          %1520 = vmatprep.mubr.f32.mxu0 0.0
          %1521 = vmatmul.mubr.f32.gmra.mrb[0].mxu0 %v1188
          %v1522 = vpop.f32.mrb[0].mxu0
          %v1523 = vadd.f32 %v1280, %v1522
          %v1524 = vpop.f32.mrb[0].mxu0
          %v1525 = vadd.f32 %v1284, %v1524
          %1526 = vmatprep.mubr.f32.mxu0 0.0
          %1527 = vmatmul.mubr.f32.gmra.mrb[0].mxu0 %v1189
          %v1528 = vpop.f32.mrb[0].mxu0
          %v1529 = vadd.f32 %v1280, %v1528
          %v1530 = vpop.f32.mrb[0].mxu0
          %v1531 = vadd.f32 %v1284, %v1530
          %1532 = vmatprep.mubr.f32.mxu0 0.0
          %1533 = vmatmul.mubr.f32.gmra.mrb[0].mxu0 %v1190
          %v1534 = vpop.f32.mrb[0].mxu0
          %v1535 = vadd.f32 %v1280, %v1534
          %v1536 = vpop.f32.mrb[0].mxu0
          %v1537 = vadd.f32 %v1284, %v1536
          %1538 = vmatprep.mubr.f32.mxu0 0.0
          %1539 = vmatmul.mubr.f32.gmra.mrb[0].mxu0 %v1191
          %v1540 = vpop.f32.mrb[0].mxu0
          %v1541 = vadd.f32 %v1280, %v1540
          %v1542 = vpop.f32.mrb[0].mxu0
          %v1543 = vadd.f32 %v1284, %v1542
          %1544 = vmatprep.mubr.f32.mxu0 0.0
          %1545 = vmatmul.mubr.f32.gmra.mrb[0].mxu0 %v1192
          %v1546 = vpop.f32.mrb[0].mxu0
          %v1547 = vadd.f32 %v1280, %v1546
          %v1548 = vpop.f32.mrb[0].mxu0
          %v1549 = vadd.f32 %v1284, %v1548
          %1550 = vmatprep.mubr.f32.mxu0 0.0
          %1551 = vmatmul.mubr.f32.gmra.mrb[0].mxu0 %v1193
          %v1552 = vpop.f32.mrb[0].mxu0
          %v1553 = vadd.f32 %v1280, %v1552
          %v1554 = vpop.f32.mrb[0].mxu0
          %v1555 = vadd.f32 %v1284, %v1554
          %1556 = vmatprep.mubr.f32.mxu0 0.0
          %1557 = vmatmul.mubr.f32.gmra.mrb[0].mxu0 %v1194
          %v1558 = vpop.f32.mrb[0].mxu0
          %v1559 = vadd.f32 %v1280, %v1558
          %v1560 = vpop.f32.mrb[0].mxu0
          %v1561 = vadd.f32 %v1284, %v1560
          %1562 = vmatprep.mubr.f32.mxu0 0.0
          %1563 = vmatmul.mubr.f32.gmra.mrb[0].mxu0 %v1195
          %v1564 = vpop.f32.mrb[0].mxu0
          %v1565 = vadd.f32 %v1280, %v1564
          %v1566 = vpop.f32.mrb[0].mxu0
          %v1567 = vadd.f32 %v1284, %v1566
          %1568 = vmatprep.mubr.f32.mxu0 0.0
          %1569 = vmatmul.mubr.f32.gmra.mrb[0].mxu0 %v1196
          %v1570 = vpop.f32.mrb[0].mxu0
          %v1571 = vadd.f32 %v1280, %v1570
          %v1572 = vpop.f32.mrb[0].mxu0
          %v1573 = vadd.f32 %v1284, %v1572
          %1574 = vmatprep.mubr.f32.mxu0 0.0
          %1575 = vmatmul.mubr.f32.gmra.mrb[0].mxu0 %v1197
          %v1576 = vpop.f32.mrb[0].mxu0
          %v1577 = vadd.f32 %v1280, %v1576
          %v1578 = vpop.f32.mrb[0].mxu0
          %v1579 = vadd.f32 %v1284, %v1578
          %1580 = vmatprep.mubr.f32.mxu0 0.0
          %1581 = vmatmul.mubr.f32.gmra.mrb[0].mxu0 %v1198
          %v1582 = vpop.f32.mrb[0].mxu0
          %v1583 = vadd.f32 %v1280, %v1582
          %v1584 = vpop.f32.mrb[0].mxu0
          %v1585 = vadd.f32 %v1284, %v1584
          %1586 = vmatprep.mubr.f32.mxu0 0.0
          %1587 = vmatmul.mubr.f32.gmra.mrb[0].mxu0 %v1199
          %v1588 = vpop.f32.mrb[0].mxu0
          %v1589 = vadd.f32 %v1280, %v1588
          %v1590 = vpop.f32.mrb[0].mxu0
          %v1591 = vadd.f32 %v1284, %v1590
          %1592 = vmatprep.mubr.f32.mxu0 0.0
          %1593 = vmatmul.mubr.f32.gmra.mrb[0].mxu0 %v1200
          %v1594 = vpop.f32.mrb[0].mxu0
          %v1595 = vadd.f32 %v1280, %v1594
          %v1596 = vpop.f32.mrb[0].mxu0
          %v1597 = vadd.f32 %v1284, %v1596
          %1598 = vmatprep.mubr.f32.mxu0 0.0
          %1599 = vmatmul.mubr.f32.gmra.mrb[0].mxu0 %v1201
          %v1600 = vpop.f32.mrb[0].mxu0
          %v1601 = vadd.f32 %v1280, %v1600
          %v1602 = vpop.f32.mrb[0].mxu0
          %v1603 = vadd.f32 %v1284, %v1602
          %1604 = vmatprep.mubr.f32.mxu0 0.0
          %1605 = vmatmul.mubr.f32.gmra.mrb[0].mxu0 %v1202
          %v1606 = vpop.f32.mrb[0].mxu0
          %v1607 = vadd.f32 %v1280, %v1606
          %v1608 = vpop.f32.mrb[0].mxu0
          %v1609 = vadd.f32 %v1284, %v1608
          %1610 = vdwg.mxu0
          %v1611 = vmax.f32 %v1356, 0.0
          %v1612 = vmax.f32 %v1358, 0.0
          %v1613 = vmax.f32 %v1517, 0.0
          %v1614 = vmax.f32 %v1519, 0.0
          %v1615 = vmax.f32 %v1362, 0.0
          %v1616 = vmax.f32 %v1364, 0.0
          %v1617 = vmax.f32 %v1523, 0.0
          %v1618 = vmax.f32 %v1525, 0.0
          %v1619 = vmax.f32 %v1368, 0.0
          %v1620 = vmax.f32 %v1370, 0.0
          %v1621 = vmax.f32 %v1529, 0.0
          %v1622 = vmax.f32 %v1531, 0.0
          %v1623 = vmax.f32 %v1374, 0.0
          %v1624 = vmax.f32 %v1376, 0.0
          %v1625 = vmax.f32 %v1535, 0.0
          %v1626 = vmax.f32 %v1537, 0.0
          %v1627 = vmax.f32 %v1380, 0.0
          %v1628 = vmax.f32 %v1382, 0.0
          %v1629 = vmax.f32 %v1541, 0.0
          %v1630 = vmax.f32 %v1543, 0.0
          %v1631 = vmax.f32 %v1386, 0.0
          %v1632 = vmax.f32 %v1388, 0.0
          %v1633 = vmax.f32 %v1547, 0.0
          %v1634 = vmax.f32 %v1549, 0.0
          %v1635 = vmax.f32 %v1392, 0.0
          %v1636 = vmax.f32 %v1394, 0.0
          %v1637 = vmax.f32 %v1553, 0.0
          %v1638 = vmax.f32 %v1555, 0.0
          %v1639 = vmax.f32 %v1398, 0.0
          %v1640 = vmax.f32 %v1400, 0.0
          %v1641 = vmax.f32 %v1559, 0.0
          %v1642 = vmax.f32 %v1561, 0.0
          %v1643 = vmax.f32 %v1404, 0.0
          %v1644 = vmax.f32 %v1406, 0.0
          %v1645 = vmax.f32 %v1565, 0.0
          %v1646 = vmax.f32 %v1567, 0.0
          %v1647 = vmax.f32 %v1410, 0.0
          %v1648 = vmax.f32 %v1412, 0.0
          %v1649 = vmax.f32 %v1571, 0.0
          %v1650 = vmax.f32 %v1573, 0.0
          %v1651 = vmax.f32 %v1416, 0.0
          %v1652 = vmax.f32 %v1418, 0.0
          %v1653 = vmax.f32 %v1577, 0.0
          %v1654 = vmax.f32 %v1579, 0.0
          %v1655 = vmax.f32 %v1422, 0.0
          %v1656 = vmax.f32 %v1424, 0.0
          %v1657 = vmax.f32 %v1583, 0.0
          %v1658 = vmax.f32 %v1585, 0.0
          %v1659 = vmax.f32 %v1428, 0.0
          %v1660 = vmax.f32 %v1430, 0.0
          %v1661 = vmax.f32 %v1589, 0.0
          %v1662 = vmax.f32 %v1591, 0.0
          %v1663 = vmax.f32 %v1434, 0.0
          %v1664 = vmax.f32 %v1436, 0.0
          %v1665 = vmax.f32 %v1595, 0.0
          %v1666 = vmax.f32 %v1597, 0.0
          %v1667 = vmax.f32 %v1440, 0.0
          %v1668 = vmax.f32 %v1442, 0.0
          %v1669 = vmax.f32 %v1601, 0.0
          %v1670 = vmax.f32 %v1603, 0.0
          %v1671 = vmax.f32 %v1446, 0.0
          %v1672 = vmax.f32 %v1448, 0.0
          %v1673 = vmax.f32 %v1607, 0.0
          %v1674 = vmax.f32 %v1609, 0.0
          %v1675 = vld [vmem:[#allocation3] sm:$0xff]
          %v1676 = vld [vmem:[%s698] sm:$0x3]
          %1677 = vmatprep.subr.mxu0 %v1612
          %1678 = vmatpush1.msra.mxu0 %v1611
          %1679 = vmatprep.subr.mxu0 %v1616
          %1680 = vmatpush1.msra.mxu0 %v1615
          %1681 = vmatprep.subr.mxu0 %v1620
          %1682 = vmatpush1.msra.mxu0 %v1619
          %1683 = vmatprep.subr.mxu0 %v1624
          %1684 = vmatpush1.msra.mxu0 %v1623
          %1685 = vmatprep.subr.mxu0 %v1628
          %1686 = vmatpush1.msra.mxu0 %v1627
          %1687 = vmatprep.subr.mxu0 %v1632
          %1688 = vmatpush1.msra.mxu0 %v1631
          %1689 = vmatprep.subr.mxu0 %v1636
          %1690 = vmatpush1.msra.mxu0 %v1635
          %1691 = vmatprep.subr.mxu0 %v1640
          %1692 = vmatpush1.msra.mxu0 %v1639
          %1693 = vmatprep.subr.mxu0 %v1644
          %1694 = vmatpush1.msra.mxu0 %v1643
          %1695 = vmatprep.subr.mxu0 %v1648
          %1696 = vmatpush1.msra.mxu0 %v1647
          %1697 = vmatprep.subr.mxu0 %v1652
          %1698 = vmatpush1.msra.mxu0 %v1651
          %1699 = vmatprep.subr.mxu0 %v1656
          %1700 = vmatpush1.msra.mxu0 %v1655
          %1701 = vmatprep.subr.mxu0 %v1660
          %1702 = vmatpush1.msra.mxu0 %v1659
          %1703 = vmatprep.subr.mxu0 %v1664
          %1704 = vmatpush1.msra.mxu0 %v1663
          %1705 = vmatprep.subr.mxu0 %v1668
          %1706 = vmatpush1.msra.mxu0 %v1667
          %1707 = vmatprep.subr.mxu0 %v1672
          %1708 = vmatpush1.msra.mxu0 %v1671
          %1709 = vmatprep.subr.mxu0 0.0
          %1710 = vmatpush1.msra.mxu0 0.0
          %1711 = vmatprep.subr.mxu0 0.0
          %1712 = vmatpush1.msra.mxu0 0.0
          %1713 = vmatprep.subr.mxu0 0.0
          %1714 = vmatpush1.msra.mxu0 0.0
          %1715 = vmatprep.subr.mxu0 0.0
          %1716 = vmatpush1.msra.mxu0 0.0
          %1717 = vmatprep.subr.mxu0 0.0
          %1718 = vmatpush1.msra.mxu0 0.0
          %1719 = vmatprep.subr.mxu0 0.0
          %1720 = vmatpush1.msra.mxu0 0.0
          %1721 = vmatprep.subr.mxu0 0.0
          %1722 = vmatpush1.msra.mxu0 0.0
          %1723 = vmatprep.subr.mxu0 0.0
          %1724 = vmatpush1.msra.mxu0 0.0
          %1725 = vmatprep.subr.mxu0 0.0
          %1726 = vmatpush1.msra.mxu0 0.0
          %1727 = vmatprep.subr.mxu0 0.0
          %1728 = vmatpush1.msra.mxu0 0.0
          %1729 = vmatprep.subr.mxu0 0.0
          %1730 = vmatpush1.msra.mxu0 0.0
          %1731 = vmatprep.subr.mxu0 0.0
          %1732 = vmatpush1.msra.mxu0 0.0
          %1733 = vmatprep.subr.mxu0 0.0
          %1734 = vmatpush1.msra.mxu0 0.0
          %1735 = vmatprep.subr.mxu0 0.0
          %1736 = vmatpush1.msra.mxu0 0.0
          %1737 = vmatprep.subr.mxu0 0.0
          %1738 = vmatpush1.msra.mxu0 0.0
          %1739 = vmatprep.subr.mxu0 0.0
          %1740 = vmatpush1.msra.mxu0 0.0
          %1741 = vmatprep.mubr.f32.mxu0 0.0
          %1742 = vmatmul.mubr.f32.gmra.mrb[0].mxu0 %v1676
          %v1743 = vpop.f32.mrb[0].mxu0
          %v1744 = vadd.f32 0.0, %v1743
          %v1745 = vpop.f32.mrb[0].mxu0
          %v1746 = vadd.f32 0.0, %v1745
          %1747 = vdwg.mxu0
          %1748 = vmatprep.subr.mxu0 %v1614
          %1749 = vmatpush1.msra.mxu0 %v1613
          %1750 = vmatprep.subr.mxu0 %v1618
          %1751 = vmatpush1.msra.mxu0 %v1617
          %1752 = vmatprep.subr.mxu0 %v1622
          %1753 = vmatpush1.msra.mxu0 %v1621
          %1754 = vmatprep.subr.mxu0 %v1626
          %1755 = vmatpush1.msra.mxu0 %v1625
          %1756 = vmatprep.subr.mxu0 %v1630
          %1757 = vmatpush1.msra.mxu0 %v1629
          %1758 = vmatprep.subr.mxu0 %v1634
          %1759 = vmatpush1.msra.mxu0 %v1633
          %1760 = vmatprep.subr.mxu0 %v1638
          %1761 = vmatpush1.msra.mxu0 %v1637
          %1762 = vmatprep.subr.mxu0 %v1642
          %1763 = vmatpush1.msra.mxu0 %v1641
          %1764 = vmatprep.subr.mxu0 %v1646
          %1765 = vmatpush1.msra.mxu0 %v1645
          %1766 = vmatprep.subr.mxu0 %v1650
          %1767 = vmatpush1.msra.mxu0 %v1649
          %1768 = vmatprep.subr.mxu0 %v1654
          %1769 = vmatpush1.msra.mxu0 %v1653
          %1770 = vmatprep.subr.mxu0 %v1658
          %1771 = vmatpush1.msra.mxu0 %v1657
          %1772 = vmatprep.subr.mxu0 %v1662
          %1773 = vmatpush1.msra.mxu0 %v1661
          %1774 = vmatprep.subr.mxu0 %v1666
          %1775 = vmatpush1.msra.mxu0 %v1665
          %1776 = vmatprep.subr.mxu0 %v1670
          %1777 = vmatpush1.msra.mxu0 %v1669
          %1778 = vmatprep.subr.mxu0 %v1674
          %1779 = vmatpush1.msra.mxu0 %v1673
          %1780 = vmatprep.subr.mxu0 0.0
          %1781 = vmatpush1.msra.mxu0 0.0
          %1782 = vmatprep.subr.mxu0 0.0
          %1783 = vmatpush1.msra.mxu0 0.0
          %1784 = vmatprep.subr.mxu0 0.0
          %1785 = vmatpush1.msra.mxu0 0.0
          %1786 = vmatprep.subr.mxu0 0.0
          %1787 = vmatpush1.msra.mxu0 0.0
          %1788 = vmatprep.subr.mxu0 0.0
          %1789 = vmatpush1.msra.mxu0 0.0
          %1790 = vmatprep.subr.mxu0 0.0
          %1791 = vmatpush1.msra.mxu0 0.0
          %1792 = vmatprep.subr.mxu0 0.0
          %1793 = vmatpush1.msra.mxu0 0.0
          %1794 = vmatprep.subr.mxu0 0.0
          %1795 = vmatpush1.msra.mxu0 0.0
          %1796 = vmatprep.subr.mxu0 0.0
          %1797 = vmatpush1.msra.mxu0 0.0
          %1798 = vmatprep.subr.mxu0 0.0
          %1799 = vmatpush1.msra.mxu0 0.0
          %1800 = vmatprep.subr.mxu0 0.0
          %1801 = vmatpush1.msra.mxu0 0.0
          %1802 = vmatprep.subr.mxu0 0.0
          %1803 = vmatpush1.msra.mxu0 0.0
          %1804 = vmatprep.subr.mxu0 0.0
          %1805 = vmatpush1.msra.mxu0 0.0
          %1806 = vmatprep.subr.mxu0 0.0
          %1807 = vmatpush1.msra.mxu0 0.0
          %1808 = vmatprep.subr.mxu0 0.0
          %1809 = vmatpush1.msra.mxu0 0.0
          %1810 = vmatprep.subr.mxu0 0.0
          %1811 = vmatpush1.msra.mxu0 0.0
          %1812 = vmatprep.mubr.f32.mxu0 0.0
          %1813 = vmatmul.mubr.f32.gmra.mrb[0].mxu0 %v1676
          %v1814 = vpop.f32.mrb[0].mxu0
          %v1815 = vadd.f32 0.0, %v1814
          %v1816 = vpop.f32.mrb[0].mxu0
          %v1817 = vadd.f32 0.0, %v1816
          %1818 = vdwg.mxu0
          %v1823 = vcombine.low %v1744, %v1746
          %v1824 = vcombine.low %v1815, %v1817
          %v1826 = vunpack.c.l.s4 1983009808
          %v1827 = vunpack.c.0.s8 %v1826
          %v1828 = vlaneseq
          %v1829 = vshrl.u32 %v1828, 7
          %v1830 = vsub.s32 %v1827, %v1829
          %v1831 = vrot.slane %v1823, %v1830
          %v1833 = vunpack.c.l.s4 1983009808
          %v1834 = vunpack.c.0.s8 %v1833
          %v1835 = vlaneseq
          %v1836 = vshrl.u32 %v1835, 7
          %v1837 = vsub.s32 %v1834, %v1836
          %v1838 = vrot.slane %v1824, %v1837
          %v1839 = vcombine.low %v1831, %v1838
          %v1841 = vadd.f32 %v1675, %v1839
          %1842 = vst [vmem:[#allocation3] sm:$0xff] %v1841
        $region124: #{tpu_custom_call.1} parent=83 // pred_fallthru
          _
        %p1843 = scmp.eq.s32.totalorder %s43, 1
        %p1844 = pnand %p1843, %p999
        %p1845 = pneg %p1844
        // Predicated region
        $region125: #{tpu_custom_call.1} parent=83 // pred_check
          _
        $region126: #{tpu_custom_call.1} parent=83 // pred_check_branch
          %1847 = sbr.rel (%p1844) target = $region128
        $region127: #{tpu_custom_call.1} parent=83 // pred_region
          %v1848 = vld [vmem:[#allocation3] sm:$0xff]
          %v1849 = vld [vmem:[#allocation13] sm:$0xff]
          %v1850 = vld [vmem:[#allocation13 + $0x8] sm:$0xff]
          %v1851 = vld [vmem:[#allocation13 + $0x10] sm:$0xff]
          %v1852 = vld [vmem:[#allocation13 + $0x18] sm:$0xff]
          %v1853 = vld [vmem:[#allocation13 + $0x20] sm:$0xff]
          %v1854 = vld [vmem:[#allocation13 + $0x28] sm:$0xff]
          %v1855 = vld [vmem:[#allocation13 + $0x30] sm:$0xff]
          %v1856 = vld [vmem:[#allocation13 + $0x38] sm:$0xff]
          %v1857 = vld [vmem:[#allocation13 + $0x40] sm:$0xff]
          %v1858 = vld [vmem:[#allocation13 + $0x48] sm:$0xff]
          %v1859 = vld [vmem:[#allocation13 + $0x50] sm:$0xff]
          %v1860 = vld [vmem:[#allocation13 + $0x58] sm:$0xff]
          %v1861 = vld [vmem:[#allocation13 + $0x60] sm:$0xff]
          %v1862 = vld [vmem:[#allocation13 + $0x68] sm:$0xff]
          %v1863 = vld [vmem:[#allocation13 + $0x70] sm:$0xff]
          %v1864 = vld [vmem:[#allocation13 + $0x78] sm:$0xff]
          %v1865 = vld [vmem:[#allocation13 + $0x80] sm:$0xff]
          %v1866 = vld [vmem:[#allocation13 + $0x88] sm:$0xff]
          %v1867 = vld [vmem:[#allocation13 + $0x90] sm:$0xff]
          %v1868 = vld [vmem:[#allocation13 + $0x98] sm:$0xff]
          %v1869 = vld [vmem:[#allocation13 + $0xa0] sm:$0xff]
          %v1870 = vld [vmem:[#allocation13 + $0xa8] sm:$0xff]
          %v1871 = vld [vmem:[#allocation13 + $0xb0] sm:$0xff]
          %v1872 = vld [vmem:[#allocation13 + $0xb8] sm:$0xff]
          %v1873 = vld [vmem:[#allocation13 + $0xc0] sm:$0xff]
          %v1874 = vld [vmem:[#allocation13 + $0xc8] sm:$0xff]
          %v1875 = vld [vmem:[#allocation13 + $0xd0] sm:$0xff]
          %v1876 = vld [vmem:[#allocation13 + $0xd8] sm:$0xff]
          %v1877 = vld [vmem:[#allocation13 + $0xe0] sm:$0xff]
          %v1878 = vld [vmem:[#allocation13 + $0xe8] sm:$0xff]
          %v1879 = vld [vmem:[#allocation13 + $0xf0] sm:$0xff]
          %v1880 = vld [vmem:[#allocation13 + $0xf8] sm:$0xff]
          %v1881 = vld [vmem:[#allocation13 + $0x100] sm:$0xff]
          %v1882 = vld [vmem:[#allocation13 + $0x108] sm:$0xff]
          %v1883 = vld [vmem:[#allocation13 + $0x110] sm:$0xff]
          %v1884 = vld [vmem:[#allocation13 + $0x118] sm:$0xff]
          %v1885 = vld [vmem:[#allocation13 + $0x120] sm:$0xff]
          %v1886 = vld [vmem:[#allocation13 + $0x128] sm:$0xff]
          %v1887 = vld [vmem:[#allocation13 + $0x130] sm:$0xff]
          %v1888 = vld [vmem:[#allocation13 + $0x138] sm:$0xff]
          %v1889 = vld [vmem:[#allocation13 + $0x140] sm:$0xff]
          %v1890 = vld [vmem:[#allocation13 + $0x148] sm:$0xff]
          %v1891 = vld [vmem:[#allocation13 + $0x150] sm:$0xff]
          %v1892 = vld [vmem:[#allocation13 + $0x158] sm:$0xff]
          %v1893 = vld [vmem:[#allocation13 + $0x160] sm:$0xff]
          %v1894 = vld [vmem:[#allocation13 + $0x168] sm:$0xff]
          %v1895 = vld [vmem:[#allocation13 + $0x170] sm:$0xff]
          %v1896 = vld [vmem:[#allocation13 + $0x178] sm:$0xff]
          %v1897 = vld [vmem:[#allocation13 + $0x180] sm:$0xff]
          %v1898 = vld [vmem:[#allocation13 + $0x188] sm:$0xff]
          %v1899 = vld [vmem:[#allocation13 + $0x190] sm:$0xff]
          %v1900 = vld [vmem:[#allocation13 + $0x198] sm:$0xff]
          %v1901 = vld [vmem:[#allocation13 + $0x1a0] sm:$0xff]
          %v1902 = vld [vmem:[#allocation13 + $0x1a8] sm:$0xff]
          %v1903 = vld [vmem:[#allocation13 + $0x1b0] sm:$0xff]
          %v1904 = vld [vmem:[#allocation13 + $0x1b8] sm:$0xff]
          %v1905 = vld [vmem:[#allocation13 + $0x1c0] sm:$0xff]
          %v1906 = vld [vmem:[#allocation13 + $0x1c8] sm:$0xff]
          %v1907 = vld [vmem:[#allocation13 + $0x1d0] sm:$0xff]
          %v1908 = vld [vmem:[#allocation13 + $0x1d8] sm:$0xff]
          %v1909 = vld [vmem:[#allocation13 + $0x1e0] sm:$0xff]
          %v1910 = vld [vmem:[#allocation13 + $0x1e8] sm:$0xff]
          %v1911 = vld [vmem:[#allocation13 + $0x1f0] sm:$0xff]
          %v1912 = vld [vmem:[#allocation13 + $0x1f8] sm:$0xff]
          %v1913 = vld [vmem:[#allocation13 + $0x200] sm:$0xff]
          %v1914 = vld [vmem:[#allocation13 + $0x208] sm:$0xff]
          %v1915 = vld [vmem:[#allocation13 + $0x210] sm:$0xff]
          %v1916 = vld [vmem:[#allocation13 + $0x218] sm:$0xff]
          %v1917 = vld [vmem:[#allocation13 + $0x220] sm:$0xff]
          %v1918 = vld [vmem:[#allocation13 + $0x228] sm:$0xff]
          %v1919 = vld [vmem:[#allocation13 + $0x230] sm:$0xff]
          %v1920 = vld [vmem:[#allocation13 + $0x238] sm:$0xff]
          %v1921 = vld [vmem:[#allocation13 + $0x240] sm:$0xff]
          %v1922 = vld [vmem:[#allocation13 + $0x248] sm:$0xff]
          %v1923 = vld [vmem:[#allocation13 + $0x250] sm:$0xff]
          %v1924 = vld [vmem:[#allocation13 + $0x258] sm:$0xff]
          %v1925 = vld [vmem:[#allocation13 + $0x260] sm:$0xff]
          %v1926 = vld [vmem:[#allocation13 + $0x268] sm:$0xff]
          %v1927 = vld [vmem:[#allocation13 + $0x270] sm:$0xff]
          %v1928 = vld [vmem:[#allocation13 + $0x278] sm:$0xff]
          %v1929 = vld [vmem:[#allocation13 + $0x280] sm:$0xff]
          %v1930 = vld [vmem:[#allocation13 + $0x288] sm:$0xff]
          %v1931 = vld [vmem:[#allocation13 + $0x290] sm:$0xff]
          %v1932 = vld [vmem:[#allocation13 + $0x298] sm:$0xff]
          %v1933 = vld [vmem:[#allocation13 + $0x2a0] sm:$0xff]
          %v1934 = vld [vmem:[#allocation13 + $0x2a8] sm:$0xff]
          %v1935 = vld [vmem:[#allocation13 + $0x2b0] sm:$0xff]
          %v1936 = vld [vmem:[#allocation13 + $0x2b8] sm:$0xff]
          %v1937 = vld [vmem:[#allocation13 + $0x2c0] sm:$0xff]
          %v1938 = vld [vmem:[#allocation13 + $0x2c8] sm:$0xff]
          %v1939 = vld [vmem:[#allocation13 + $0x2d0] sm:$0xff]
          %v1940 = vld [vmem:[#allocation13 + $0x2d8] sm:$0xff]
          %v1941 = vld [vmem:[#allocation13 + $0x2e0] sm:$0xff]
          %v1942 = vld [vmem:[#allocation13 + $0x2e8] sm:$0xff]
          %v1943 = vld [vmem:[#allocation13 + $0x2f0] sm:$0xff]
          %v1944 = vld [vmem:[#allocation13 + $0x2f8] sm:$0xff]
          %v1945 = vld [vmem:[#allocation13 + $0x300] sm:$0xff]
          %v1946 = vld [vmem:[#allocation13 + $0x308] sm:$0xff]
          %v1947 = vld [vmem:[#allocation13 + $0x310] sm:$0xff]
          %v1948 = vld [vmem:[#allocation13 + $0x318] sm:$0xff]
          %v1949 = vld [vmem:[#allocation13 + $0x320] sm:$0xff]
          %v1950 = vld [vmem:[#allocation13 + $0x328] sm:$0xff]
          %v1951 = vld [vmem:[#allocation13 + $0x330] sm:$0xff]
          %v1952 = vld [vmem:[#allocation13 + $0x338] sm:$0xff]
          %v1953 = vld [vmem:[#allocation13 + $0x340] sm:$0xff]
          %v1954 = vld [vmem:[#allocation13 + $0x348] sm:$0xff]
          %v1955 = vld [vmem:[#allocation13 + $0x350] sm:$0xff]
          %v1956 = vld [vmem:[#allocation13 + $0x358] sm:$0xff]
          %v1957 = vld [vmem:[#allocation13 + $0x360] sm:$0xff]
          %v1958 = vld [vmem:[#allocation13 + $0x368] sm:$0xff]
          %v1959 = vld [vmem:[#allocation13 + $0x370] sm:$0xff]
          %v1960 = vld [vmem:[#allocation13 + $0x378] sm:$0xff]
          %v1961 = vld [vmem:[#allocation13 + $0x380] sm:$0xff]
          %v1962 = vld [vmem:[#allocation13 + $0x388] sm:$0xff]
          %v1963 = vld [vmem:[#allocation13 + $0x390] sm:$0xff]
          %v1964 = vld [vmem:[#allocation13 + $0x398] sm:$0xff]
          %v1965 = vld [vmem:[#allocation13 + $0x3a0] sm:$0xff]
          %v1966 = vld [vmem:[#allocation13 + $0x3a8] sm:$0xff]
          %v1967 = vld [vmem:[#allocation13 + $0x3b0] sm:$0xff]
          %v1968 = vld [vmem:[#allocation13 + $0x3b8] sm:$0xff]
          %v1969 = vld [vmem:[#allocation13 + $0x3c0] sm:$0xff]
          %v1970 = vld [vmem:[#allocation13 + $0x3c8] sm:$0xff]
          %v1971 = vld [vmem:[#allocation13 + $0x3d0] sm:$0xff]
          %v1972 = vld [vmem:[#allocation13 + $0x3d8] sm:$0xff]
          %v1973 = vld [vmem:[#allocation13 + $0x3e0] sm:$0xff]
          %v1974 = vld [vmem:[#allocation13 + $0x3e8] sm:$0xff]
          %v1975 = vld [vmem:[#allocation13 + $0x3f0] sm:$0xff]
          %v1976 = vld [vmem:[#allocation13 + $0x3f8] sm:$0xff]
          %v1977 = vld [vmem:[%s8] sm:$0x3]
          %v1979 = vlaneseq
          %v1980 = vshrl.u32 %v1979, 7
          %v1981 = vsub.s32 0, %v1980
          %v1982 = vrot.slane %v1977, %v1981
          %v1983 = vlaneseq
          %v1984 = vshrl.u32 %v1983, 7
          %v1985 = vsub.s32 1, %v1984
          %v1986 = vrot.slane %v1977, %v1985
          %v1990 = vcombine.high %v1848, %v1848
          %v1992 = vunpack.c.l.s4 1983009808
          %v1993 = vunpack.c.0.s8 %v1992
          %v1994 = vlaneseq
          %v1995 = vshrl.u32 %v1994, 7
          %v1996 = vsub.s32 %v1993, %v1995
          %v1997 = vrot.slane %v1848, %v1996
          %v1999 = vunpack.c.l.s4 1983009808
          %v2000 = vunpack.c.0.s8 %v1999
          %v2001 = vlaneseq
          %v2002 = vshrl.u32 %v2001, 7
          %v2003 = vsub.s32 %v2000, %v2002
          %v2004 = vrot.slane %v1990, %v2003
          %v2005 = vcombine.high %v1997, %v1997
          %v2006 = vcombine.high %v2004, %v2004
          %2011 = vmatprep.subr.mxu0 %v1850
          %2012 = vmatpush1.msra.mxu0 %v1849
          %2013 = vmatprep.subr.mxu0 %v1852
          %2014 = vmatpush1.msra.mxu0 %v1851
          %2015 = vmatprep.subr.mxu0 %v1854
          %2016 = vmatpush1.msra.mxu0 %v1853
          %2017 = vmatprep.subr.mxu0 %v1856
          %2018 = vmatpush1.msra.mxu0 %v1855
          %2019 = vmatprep.subr.mxu0 %v1858
          %2020 = vmatpush1.msra.mxu0 %v1857
          %2021 = vmatprep.subr.mxu0 %v1860
          %2022 = vmatpush1.msra.mxu0 %v1859
          %2023 = vmatprep.subr.mxu0 %v1862
          %2024 = vmatpush1.msra.mxu0 %v1861
          %2025 = vmatprep.subr.mxu0 %v1864
          %2026 = vmatpush1.msra.mxu0 %v1863
          %2027 = vmatprep.subr.mxu0 %v1866
          %2028 = vmatpush1.msra.mxu0 %v1865
          %2029 = vmatprep.subr.mxu0 %v1868
          %2030 = vmatpush1.msra.mxu0 %v1867
          %2031 = vmatprep.subr.mxu0 %v1870
          %2032 = vmatpush1.msra.mxu0 %v1869
          %2033 = vmatprep.subr.mxu0 %v1872
          %2034 = vmatpush1.msra.mxu0 %v1871
          %2035 = vmatprep.subr.mxu0 %v1874
          %2036 = vmatpush1.msra.mxu0 %v1873
          %2037 = vmatprep.subr.mxu0 %v1876
          %2038 = vmatpush1.msra.mxu0 %v1875
          %2039 = vmatprep.subr.mxu0 %v1878
          %2040 = vmatpush1.msra.mxu0 %v1877
          %2041 = vmatprep.subr.mxu0 %v1880
          %2042 = vmatpush1.msra.mxu0 %v1879
          %2043 = vmatprep.subr.mxu0 %v1882
          %2044 = vmatpush1.msra.mxu0 %v1881
          %2045 = vmatprep.subr.mxu0 %v1884
          %2046 = vmatpush1.msra.mxu0 %v1883
          %2047 = vmatprep.subr.mxu0 %v1886
          %2048 = vmatpush1.msra.mxu0 %v1885
          %2049 = vmatprep.subr.mxu0 %v1888
          %2050 = vmatpush1.msra.mxu0 %v1887
          %2051 = vmatprep.subr.mxu0 %v1890
          %2052 = vmatpush1.msra.mxu0 %v1889
          %2053 = vmatprep.subr.mxu0 %v1892
          %2054 = vmatpush1.msra.mxu0 %v1891
          %2055 = vmatprep.subr.mxu0 %v1894
          %2056 = vmatpush1.msra.mxu0 %v1893
          %2057 = vmatprep.subr.mxu0 %v1896
          %2058 = vmatpush1.msra.mxu0 %v1895
          %2059 = vmatprep.subr.mxu0 %v1898
          %2060 = vmatpush1.msra.mxu0 %v1897
          %2061 = vmatprep.subr.mxu0 %v1900
          %2062 = vmatpush1.msra.mxu0 %v1899
          %2063 = vmatprep.subr.mxu0 %v1902
          %2064 = vmatpush1.msra.mxu0 %v1901
          %2065 = vmatprep.subr.mxu0 %v1904
          %2066 = vmatpush1.msra.mxu0 %v1903
          %2067 = vmatprep.subr.mxu0 %v1906
          %2068 = vmatpush1.msra.mxu0 %v1905
          %2069 = vmatprep.subr.mxu0 %v1908
          %2070 = vmatpush1.msra.mxu0 %v1907
          %2071 = vmatprep.subr.mxu0 %v1910
          %2072 = vmatpush1.msra.mxu0 %v1909
          %2073 = vmatprep.subr.mxu0 %v1912
          %2074 = vmatpush1.msra.mxu0 %v1911
          %2075 = vmatprep.mubr.f32.mxu0 %v2005
          %2076 = vmatmul.mubr.f32.gmra.mrb[0].mxu0 %v1997
          %v2077 = vpop.f32.mrb[0].mxu0
          %v2078 = vadd.f32 %v1982, %v2077
          %v2079 = vpop.f32.mrb[0].mxu0
          %v2080 = vadd.f32 %v1986, %v2079
          %2081 = vdwg.mxu0
          %2082 = vmatprep.subr.mxu0 %v1914
          %2083 = vmatpush1.msra.mxu0 %v1913
          %2084 = vmatprep.subr.mxu0 %v1916
          %2085 = vmatpush1.msra.mxu0 %v1915
          %2086 = vmatprep.subr.mxu0 %v1918
          %2087 = vmatpush1.msra.mxu0 %v1917
          %2088 = vmatprep.subr.mxu0 %v1920
          %2089 = vmatpush1.msra.mxu0 %v1919
          %2090 = vmatprep.subr.mxu0 %v1922
          %2091 = vmatpush1.msra.mxu0 %v1921
          %2092 = vmatprep.subr.mxu0 %v1924
          %2093 = vmatpush1.msra.mxu0 %v1923
          %2094 = vmatprep.subr.mxu0 %v1926
          %2095 = vmatpush1.msra.mxu0 %v1925
          %2096 = vmatprep.subr.mxu0 %v1928
          %2097 = vmatpush1.msra.mxu0 %v1927
          %2098 = vmatprep.subr.mxu0 %v1930
          %2099 = vmatpush1.msra.mxu0 %v1929
          %2100 = vmatprep.subr.mxu0 %v1932
          %2101 = vmatpush1.msra.mxu0 %v1931
          %2102 = vmatprep.subr.mxu0 %v1934
          %2103 = vmatpush1.msra.mxu0 %v1933
          %2104 = vmatprep.subr.mxu0 %v1936
          %2105 = vmatpush1.msra.mxu0 %v1935
          %2106 = vmatprep.subr.mxu0 %v1938
          %2107 = vmatpush1.msra.mxu0 %v1937
          %2108 = vmatprep.subr.mxu0 %v1940
          %2109 = vmatpush1.msra.mxu0 %v1939
          %2110 = vmatprep.subr.mxu0 %v1942
          %2111 = vmatpush1.msra.mxu0 %v1941
          %2112 = vmatprep.subr.mxu0 %v1944
          %2113 = vmatpush1.msra.mxu0 %v1943
          %2114 = vmatprep.subr.mxu0 %v1946
          %2115 = vmatpush1.msra.mxu0 %v1945
          %2116 = vmatprep.subr.mxu0 %v1948
          %2117 = vmatpush1.msra.mxu0 %v1947
          %2118 = vmatprep.subr.mxu0 %v1950
          %2119 = vmatpush1.msra.mxu0 %v1949
          %2120 = vmatprep.subr.mxu0 %v1952
          %2121 = vmatpush1.msra.mxu0 %v1951
          %2122 = vmatprep.subr.mxu0 %v1954
          %2123 = vmatpush1.msra.mxu0 %v1953
          %2124 = vmatprep.subr.mxu0 %v1956
          %2125 = vmatpush1.msra.mxu0 %v1955
          %2126 = vmatprep.subr.mxu0 %v1958
          %2127 = vmatpush1.msra.mxu0 %v1957
          %2128 = vmatprep.subr.mxu0 %v1960
          %2129 = vmatpush1.msra.mxu0 %v1959
          %2130 = vmatprep.subr.mxu0 %v1962
          %2131 = vmatpush1.msra.mxu0 %v1961
          %2132 = vmatprep.subr.mxu0 %v1964
          %2133 = vmatpush1.msra.mxu0 %v1963
          %2134 = vmatprep.subr.mxu0 %v1966
          %2135 = vmatpush1.msra.mxu0 %v1965
          %2136 = vmatprep.subr.mxu0 %v1968
          %2137 = vmatpush1.msra.mxu0 %v1967
          %2138 = vmatprep.subr.mxu0 %v1970
          %2139 = vmatpush1.msra.mxu0 %v1969
          %2140 = vmatprep.subr.mxu0 %v1972
          %2141 = vmatpush1.msra.mxu0 %v1971
          %2142 = vmatprep.subr.mxu0 %v1974
          %2143 = vmatpush1.msra.mxu0 %v1973
          %2144 = vmatprep.subr.mxu0 %v1976
          %2145 = vmatpush1.msra.mxu0 %v1975
          %2146 = vmatprep.mubr.f32.mxu0 %v2006
          %2147 = vmatmul.mubr.f32.gmra.mrb[0].mxu0 %v2004
          %v2148 = vpop.f32.mrb[0].mxu0
          %v2149 = vadd.f32 %v2078, %v2148
          %v2150 = vpop.f32.mrb[0].mxu0
          %v2151 = vadd.f32 %v2080, %v2150
          %2152 = vdwg.mxu0
          %vm2153 = vcmask 1041408
          %v2154 = vsel %vm2153, %v2149, 0.0
          %v2155 = vrot.slane %v2154, 4
          %v2156 = vadd.f32 %v2154, %v2155
          %v2157 = vrot.slane %v2156, 2
          %v2158 = vadd.f32 %v2156, %v2157
          %v2159 = vrot.slane %v2158, 1
          %v2160 = vadd.f32 %v2158, %v2159
          %v2161 = vsel %vm2153, %v2151, 0.0
          %v2162 = vrot.slane %v2161, 4
          %v2163 = vadd.f32 %v2161, %v2162
          %v2164 = vrot.slane %v2163, 2
          %v2165 = vadd.f32 %v2163, %v2164
          %v2166 = vrot.slane %v2165, 1
          %v2167 = vadd.f32 %v2165, %v2166
          %v2168 = vrcp.pop 2.0
          %v2169 = vmul.f32 %v2160, %v2168
          %v2170 = vmul.f32 %v2167, %v2168
          %v2171 = vsub.f32 %v2149, %v2169
          %v2172 = vsub.f32 %v2151, %v2170
          %v2173 = vmul.f32 %v2171, %v2171
          %v2174 = vmul.f32 %v2172, %v2172
          %v2175 = vsel %vm2153, %v2173, 0.0
          %v2176 = vrot.slane %v2175, 4
          %v2177 = vadd.f32 %v2175, %v2176
          %v2178 = vrot.slane %v2177, 2
          %v2179 = vadd.f32 %v2177, %v2178
          %v2180 = vrot.slane %v2179, 1
          %v2181 = vadd.f32 %v2179, %v2180
          %v2182 = vsel %vm2153, %v2174, 0.0
          %v2183 = vrot.slane %v2182, 4
          %v2184 = vadd.f32 %v2182, %v2183
          %v2185 = vrot.slane %v2184, 2
          %v2186 = vadd.f32 %v2184, %v2185
          %v2187 = vrot.slane %v2186, 1
          %v2188 = vadd.f32 %v2186, %v2187
          %v2189 = vmul.f32 %v2181, %v2168
          %v2190 = vmul.f32 %v2188, %v2168
          %v2191 = vadd.f32 %v2189, 1e-05
          %v2192 = vadd.f32 %v2190, 1e-05
          %v2193 = vrsqrt.pop %v2191
          %v2194 = vrsqrt.pop %v2192
          %v2195 = vmul.f32 %v2171, %v2193
          %v2196 = vmul.f32 %v2172, %v2194
          %v2197 = vld [vmem:[%s9] sm:$0x3]
          %v2199 = vlaneseq
          %v2200 = vshrl.u32 %v2199, 7
          %v2201 = vsub.s32 0, %v2200
          %v2202 = vrot.slane %v2197, %v2201
          %v2203 = vlaneseq
          %v2204 = vshrl.u32 %v2203, 7
          %v2205 = vsub.s32 1, %v2204
          %v2206 = vrot.slane %v2197, %v2205
          %v2209 = vmul.f32 %v2202, %v2195
          %v2210 = vmul.f32 %v2206, %v2196
          %v2211 = vld [vmem:[%s10] sm:$0x3]
          %v2213 = vlaneseq
          %v2214 = vshrl.u32 %v2213, 7
          %v2215 = vsub.s32 0, %v2214
          %v2216 = vrot.slane %v2211, %v2215
          %v2217 = vlaneseq
          %v2218 = vshrl.u32 %v2217, 7
          %v2219 = vsub.s32 1, %v2218
          %v2220 = vrot.slane %v2211, %v2219
          %v2223 = vadd.f32 %v2209, %v2216
          %v2224 = vadd.f32 %v2210, %v2220
          %v2225 = vmax.f32 %v2223, 0.0
          %v2226 = vmax.f32 %v2224, 0.0
          %v2227 = vld [vmem:[%s13] sm:$0x3]
          %v2228 = vld [vmem:[%s11] sm:$0x77]
          %v2229 = vld [vmem:[%s12] sm:$0x3]
          %2231 = vset.pattern.permute.xlu0 0
          %2232 = vperm.xlu0 %2231, %v2227
          %v2233 = vpop.permute.xlu0 %2232
          %v2236 = vlaneseq
          %v2237 = vshrl.u32 %v2236, 7
          %v2238 = vsub.s32 0, %v2237
          %v2239 = vrot.slane %v2228, %v2238
          %v2240 = vlaneseq
          %v2241 = vshrl.u32 %v2240, 7
          %v2242 = vsub.s32 4, %v2241
          %v2243 = vrot.slane %v2228, %v2242
          %v2246 = vlaneseq
          %v2247 = vshrl.u32 %v2246, 7
          %v2248 = vsub.s32 0, %v2247
          %v2249 = vrot.slane %v2239, %v2248
          %v2250 = vlaneseq
          %v2251 = vshrl.u32 %v2250, 7
          %v2252 = vsub.s32 0, %v2251
          %v2253 = vrot.slane %v2243, %v2252
          %v2254 = vmul.f32 %v2233, %v2249
          %v2255 = vmul.f32 %v2233, %v2253
          %v2257 = vlaneseq
          %v2258 = vshrl.u32 %v2257, 7
          %v2259 = vsub.s32 0, %v2258
          %v2260 = vrot.slane %v2229, %v2259
          %v2261 = vlaneseq
          %v2262 = vshrl.u32 %v2261, 7
          %v2263 = vsub.s32 1, %v2262
          %v2264 = vrot.slane %v2229, %v2263
          %v2267 = vadd.f32 %v2260, %v2254
          %v2268 = vadd.f32 %v2264, %v2255
          %2269 = vset.pattern.permute.xlu0 1
          %2270 = vperm.xlu0 %2269, %v2227
          %v2271 = vpop.permute.xlu0 %2270
          %v2273 = vlaneseq
          %v2274 = vshrl.u32 %v2273, 7
          %v2275 = vsub.s32 1, %v2274
          %v2276 = vrot.slane %v2228, %v2275
          %v2277 = vlaneseq
          %v2278 = vshrl.u32 %v2277, 7
          %v2279 = vsub.s32 5, %v2278
          %v2280 = vrot.slane %v2228, %v2279
          %v2283 = vlaneseq
          %v2284 = vshrl.u32 %v2283, 7
          %v2285 = vsub.s32 1, %v2284
          %v2286 = vrot.slane %v2276, %v2285
          %v2287 = vlaneseq
          %v2288 = vshrl.u32 %v2287, 7
          %v2289 = vsub.s32 1, %v2288
          %v2290 = vrot.slane %v2280, %v2289
          %v2291 = vmul.f32 %v2271, %v2286
          %v2292 = vmul.f32 %v2271, %v2290
          %v2293 = vadd.f32 %v2267, %v2291
          %v2294 = vadd.f32 %v2268, %v2292
          %2295 = vset.pattern.permute.xlu0 2
          %2296 = vperm.xlu0 %2295, %v2227
          %v2297 = vpop.permute.xlu0 %2296
          %v2299 = vlaneseq
          %v2300 = vshrl.u32 %v2299, 7
          %v2301 = vsub.s32 2, %v2300
          %v2302 = vrot.slane %v2228, %v2301
          %v2303 = vlaneseq
          %v2304 = vshrl.u32 %v2303, 7
          %v2305 = vsub.s32 6, %v2304
          %v2306 = vrot.slane %v2228, %v2305
          %v2309 = vlaneseq
          %v2310 = vshrl.u32 %v2309, 7
          %v2311 = vsub.s32 2, %v2310
          %v2312 = vrot.slane %v2302, %v2311
          %v2313 = vlaneseq
          %v2314 = vshrl.u32 %v2313, 7
          %v2315 = vsub.s32 2, %v2314
          %v2316 = vrot.slane %v2306, %v2315
          %v2317 = vmul.f32 %v2297, %v2312
          %v2318 = vmul.f32 %v2297, %v2316
          %v2319 = vadd.f32 %v2293, %v2317
          %v2320 = vadd.f32 %v2294, %v2318
          %v2321 = vmul.f32 %v2319, %v2225
          %v2322 = vmul.f32 %v2320, %v2226
          %v2323 = vld [vmem:[#allocation15] sm:$0xff]
          %v2324 = vld [vmem:[#allocation15 + $0x8] sm:$0xff]
          %v2325 = vld [vmem:[#allocation15 + $0x10] sm:$0xff]
          %v2326 = vld [vmem:[#allocation15 + $0x18] sm:$0xff]
          %v2327 = vld [vmem:[#allocation15 + $0x20] sm:$0xff]
          %v2328 = vld [vmem:[#allocation15 + $0x28] sm:$0xff]
          %v2329 = vld [vmem:[#allocation15 + $0x30] sm:$0xff]
          %v2330 = vld [vmem:[#allocation15 + $0x38] sm:$0xff]
          %v2331 = vld [vmem:[#allocation15 + $0x40] sm:$0xff]
          %v2332 = vld [vmem:[#allocation15 + $0x48] sm:$0xff]
          %v2333 = vld [vmem:[#allocation15 + $0x50] sm:$0xff]
          %v2334 = vld [vmem:[#allocation15 + $0x58] sm:$0xff]
          %v2335 = vld [vmem:[#allocation15 + $0x60] sm:$0xff]
          %v2336 = vld [vmem:[#allocation15 + $0x68] sm:$0xff]
          %v2337 = vld [vmem:[#allocation15 + $0x70] sm:$0xff]
          %v2338 = vld [vmem:[#allocation15 + $0x78] sm:$0xff]
          %v2339 = vld [vmem:[#allocation15 + $0x80] sm:$0xff]
          %v2340 = vld [vmem:[#allocation15 + $0x88] sm:$0xff]
          %v2341 = vld [vmem:[#allocation15 + $0x90] sm:$0xff]
          %v2342 = vld [vmem:[#allocation15 + $0x98] sm:$0xff]
          %v2343 = vld [vmem:[#allocation15 + $0xa0] sm:$0xff]
          %v2344 = vld [vmem:[#allocation15 + $0xa8] sm:$0xff]
          %v2345 = vld [vmem:[#allocation15 + $0xb0] sm:$0xff]
          %v2346 = vld [vmem:[#allocation15 + $0xb8] sm:$0xff]
          %v2347 = vld [vmem:[#allocation15 + $0xc0] sm:$0xff]
          %v2348 = vld [vmem:[#allocation15 + $0xc8] sm:$0xff]
          %v2349 = vld [vmem:[#allocation15 + $0xd0] sm:$0xff]
          %v2350 = vld [vmem:[#allocation15 + $0xd8] sm:$0xff]
          %v2351 = vld [vmem:[#allocation15 + $0xe0] sm:$0xff]
          %v2352 = vld [vmem:[#allocation15 + $0xe8] sm:$0xff]
          %v2353 = vld [vmem:[#allocation15 + $0xf0] sm:$0xff]
          %v2354 = vld [vmem:[#allocation15 + $0xf8] sm:$0xff]
          %v2355 = vld [vmem:[%s15] sm:$0x1]
          %v2357 = vlaneseq
          %v2358 = vshrl.u32 %v2357, 7
          %v2359 = vsub.s32 0, %v2358
          %v2360 = vrot.slane %v2355, %v2359
          %2362 = vmatprep.subr.mxu0 0.0
          %2363 = vmatpush1.msra.mxu0 %v2323
          %2364 = vmatprep.subr.mxu0 0.0
          %2365 = vmatpush1.msra.mxu0 %v2324
          %2366 = vmatprep.subr.mxu0 0.0
          %2367 = vmatpush1.msra.mxu0 %v2325
          %2368 = vmatprep.subr.mxu0 0.0
          %2369 = vmatpush1.msra.mxu0 %v2326
          %2370 = vmatprep.subr.mxu0 0.0
          %2371 = vmatpush1.msra.mxu0 %v2327
          %2372 = vmatprep.subr.mxu0 0.0
          %2373 = vmatpush1.msra.mxu0 %v2328
          %2374 = vmatprep.subr.mxu0 0.0
          %2375 = vmatpush1.msra.mxu0 %v2329
          %2376 = vmatprep.subr.mxu0 0.0
          %2377 = vmatpush1.msra.mxu0 %v2330
          %2378 = vmatprep.subr.mxu0 0.0
          %2379 = vmatpush1.msra.mxu0 %v2331
          %2380 = vmatprep.subr.mxu0 0.0
          %2381 = vmatpush1.msra.mxu0 %v2332
          %2382 = vmatprep.subr.mxu0 0.0
          %2383 = vmatpush1.msra.mxu0 %v2333
          %2384 = vmatprep.subr.mxu0 0.0
          %2385 = vmatpush1.msra.mxu0 %v2334
          %2386 = vmatprep.subr.mxu0 0.0
          %2387 = vmatpush1.msra.mxu0 %v2335
          %2388 = vmatprep.subr.mxu0 0.0
          %2389 = vmatpush1.msra.mxu0 %v2336
          %2390 = vmatprep.subr.mxu0 0.0
          %2391 = vmatpush1.msra.mxu0 %v2337
          %2392 = vmatprep.subr.mxu0 0.0
          %2393 = vmatpush1.msra.mxu0 %v2338
          %2394 = vmatprep.subr.mxu0 0.0
          %2395 = vmatpush1.msra.mxu0 %v2339
          %2396 = vmatprep.subr.mxu0 0.0
          %2397 = vmatpush1.msra.mxu0 %v2340
          %2398 = vmatprep.subr.mxu0 0.0
          %2399 = vmatpush1.msra.mxu0 %v2341
          %2400 = vmatprep.subr.mxu0 0.0
          %2401 = vmatpush1.msra.mxu0 %v2342
          %2402 = vmatprep.subr.mxu0 0.0
          %2403 = vmatpush1.msra.mxu0 %v2343
          %2404 = vmatprep.subr.mxu0 0.0
          %2405 = vmatpush1.msra.mxu0 %v2344
          %2406 = vmatprep.subr.mxu0 0.0
          %2407 = vmatpush1.msra.mxu0 %v2345
          %2408 = vmatprep.subr.mxu0 0.0
          %2409 = vmatpush1.msra.mxu0 %v2346
          %2410 = vmatprep.subr.mxu0 0.0
          %2411 = vmatpush1.msra.mxu0 %v2347
          %2412 = vmatprep.subr.mxu0 0.0
          %2413 = vmatpush1.msra.mxu0 %v2348
          %2414 = vmatprep.subr.mxu0 0.0
          %2415 = vmatpush1.msra.mxu0 %v2349
          %2416 = vmatprep.subr.mxu0 0.0
          %2417 = vmatpush1.msra.mxu0 %v2350
          %2418 = vmatprep.subr.mxu0 0.0
          %2419 = vmatpush1.msra.mxu0 %v2351
          %2420 = vmatprep.subr.mxu0 0.0
          %2421 = vmatpush1.msra.mxu0 %v2352
          %2422 = vmatprep.subr.mxu0 0.0
          %2423 = vmatpush1.msra.mxu0 %v2353
          %2424 = vmatprep.subr.mxu0 0.0
          %2425 = vmatpush1.msra.mxu0 %v2354
          %2426 = vmatprep.mubr.f32.mxu0 %v2322
          %2427 = vmatmul.mubr.f32.gmra.mrb[0].mxu0 %v2321
          %v2428 = vpop.f32.mrb[0].mxu0
          %v2429 = vadd.f32 %v2360, %v2428
          %v2430 = vpop.f32.mrb[0].mxu0
          %2431 = vdwg.mxu0
          %2432 = vst [vmem:[#allocation16] sm:$0x3] %v2429
          %v2433 = vxor.u32 %v2429, 2147483648
          %v2434 = vmul.f32 %v2433, 1.442695
          %v2435 = vpow.pop %v2434
          %v2436 = vadd.f32 %v2435, 1.0
          %v2437 = vrcp.pop %v2436
          %v2438 = vmul.f32 1.0, %v2437
          %2439 = vst [vmem:[#allocation17] sm:$0x3] %v2438
        $region128: #{tpu_custom_call.1} parent=83 // pred_fallthru
          _
        // Predicated region
        $region129: #{tpu_custom_call.1} parent=83 // pred_check
          %p2440 = pneg %p417
        $region130: #{tpu_custom_call.1} parent=83 // pred_check_branch
          %2442 = sbr.rel (%p2440) target = $region132
        $region131: #{tpu_custom_call.1} parent=83 // pred_region
          %s2444 = ssub.s32 32, 32
          %2445 = vsyncadd [#allocation6], %s2444
          %s2447 = sshll.u32 [#allocation16], 4
          %s2448 = int_to_ptr.vmem [resolvable:$true] %s2447
          %2450 = dma.vmem_to_hbm [thread:$0]  %s2448, 32, %s16, [#allocation6]
        $region132: #{tpu_custom_call.1} parent=83 // pred_fallthru
          _
        // Predicated region
        $region133: #{tpu_custom_call.1} parent=83 // pred_check
          %p2451 = pneg %p438
        $region134: #{tpu_custom_call.1} parent=83 // pred_check_branch
          %2453 = sbr.rel (%p2451) target = $region136
        $region135: #{tpu_custom_call.1} parent=83 // pred_region
          %s2455 = ssub.s32 32, 32
          %2456 = vsyncadd [#allocation18], %s2455
          %s2458 = sshll.u32 [#allocation17], 4
          %s2459 = int_to_ptr.vmem [resolvable:$true] %s2458
          %2461 = dma.vmem_to_hbm [thread:$0]  %s2459, 32, %s17, [#allocation18]
        $region136: #{tpu_custom_call.1} parent=83 // pred_fallthru
          _
        // Predicated region
        $region137: #{tpu_custom_call.1} parent=83 // pred_check
          %p2462 = pneg %p417
        $region138: #{tpu_custom_call.1} parent=83 // pred_check_branch
          %2464 = sbr.rel (%p2462) target = $region140
        $region139: #{tpu_custom_call.1} parent=83 // pred_region
          %2465 = dma.done [#allocation6], 32
        $region140: #{tpu_custom_call.1} parent=83 // pred_fallthru
          _
        // Predicated region
        $region141: #{tpu_custom_call.1} parent=83 // pred_check
          %p2466 = pneg %p438
        $region142: #{tpu_custom_call.1} parent=83 // pred_check_branch
          %2468 = sbr.rel (%p2466) target = $region144
        $region143: #{tpu_custom_call.1} parent=83 // pred_region
          %2469 = dma.done [#allocation18], 32
        $region144: #{tpu_custom_call.1} parent=83 // pred_fallthru
          _
      $region84: #{tpu_custom_call.1} parent=5 // pred_fallthru
        _
      %p2470 = scmp.le.s32.totalorder 2, %s34
      // Predicated region
      $region145: #{tpu_custom_call.1} parent=5 // pred_check
        %p2471 = pneg %p2470
      $region146: #{tpu_custom_call.1} parent=5 // pred_check_branch
        %2473 = sbr.rel (%p2471) target = $region148
      $region147: #{tpu_custom_call.1} parent=5 // pred_region
        %s2474 = ssub.s32 %s34, 2
      $region148: #{tpu_custom_call.1} parent=5 // pred_fallthru
        _
    $region6: #{tpu_custom_call.1} parent=1 // loop_footer
      %s38 = sadd.s32 1, %s34
    $region7: #{tpu_custom_call.1} parent=1 // loop_footer_branch
      %33 = sbr.rel target = $region3
    $region8: #{tpu_custom_call.1} parent=1 // loop_exit
      _
    %2475 = vsyncpa [#allocation5], 1
    %s2476 = scalar_lea.sflag [#allocation5], 1
    %2477 = vsyncpa %s2476, 1
    %2478 = vsyncpa [#allocation8], 1
    %s2479 = scalar_lea.sflag [#allocation8], 1
    %2480 = vsyncpa %s2479, 1
    %2481 = vsyncpa [#allocation11], 1
    %2482 = vsyncpa [#allocation14], 1
    %2483 = vsyncpa [#allocation6], 1
    %s2484 = scalar_lea.sflag [#allocation6], 1
    %2485 = vsyncpa %s2484, 1
    %2486 = vsyncpa [#allocation18], 1

</llo_original>
